<compile_context>
chip_gen: v7x
topology: tpu7x:2x2x1
jax: 0.10.0
libtpu: 0.0.40
codegen_flags: <defaults>
</compile_context>

<pallas_src>
import functools
import math

import jax
import jax.numpy as jnp
from jax import lax
from jax.experimental import pallas as pl
from jax.experimental.pallas import tpu as pltpu


def attention_block_kernel(x_ref, gamma_ref, beta_ref, gmat_ref,
                           wqkv_ref, bqkv_ref, wproj_ref, bproj_ref,
                           o_ref, qkv_ref, a_ref,
                           *, num_heads, eps, inv_count, q_tile):
    """Per-batch fused AttentionBlock.

    x_ref    : (T, C)  f32 input (seq-major, channels on lanes)
    gamma_ref: (1, C)  GroupNorm weight (f32)
    beta_ref : (1, C)  GroupNorm bias (f32)
    gmat_ref : (C, G)  group membership one-hot matrix (f32)
    wqkv_ref : (C, 3C) qkv conv weight^T, bf16, softmax scale folded into q cols
    bqkv_ref : (1, 3C) f32, softmax scale folded into q part
    wproj_ref: (C, C)  proj conv weight^T, bf16
    bproj_ref: (1, C)  f32
    o_ref    : (T, C)  output
    qkv_ref  : (T, 3C) bf16 VMEM scratch
    a_ref    : (T, C)  bf16 VMEM scratch (concatenated head outputs)
    """
    x = x_ref[...].astype(jnp.float32)                      # (T, C)
    T, C = x.shape
    gmat = gmat_ref[...]                                     # (C, G)
    dn_last = (((1,), (1,)), ((), ()))                       # contract last vs last

    # ---------------- GroupNorm(32, C) statistics (f32) ----------------
    s1 = jnp.sum(x, axis=0, keepdims=True)                   # (1, C) sum over T
    s2 = jnp.sum(x * x, axis=0, keepdims=True)                # (1, C)
    gmean = jnp.dot(s1, gmat, preferred_element_type=jnp.float32) * inv_count   # (1, G)
    gmsq = jnp.dot(s2, gmat, preferred_element_type=jnp.float32) * inv_count    # (1, G)
    ginv = lax.rsqrt(gmsq - gmean * gmean + eps)              # (1, G)
    # broadcast group stats back to channels (contract over G, no transpose)
    mean_c = lax.dot_general(gmean, gmat, dn_last, preferred_element_type=jnp.float32)  # (1, C)
    inv_c = lax.dot_general(ginv, gmat, dn_last, preferred_element_type=jnp.float32)    # (1, C)
    # fused affine: xn = x * a + b   (2 elementwise passes instead of 4)
    a_aff = inv_c * gamma_ref[...]
    b_aff = beta_ref[...] - mean_c * a_aff
    xn = x * a_aff + b_aff                                    # (T, C) f32

    # ---------------- 1x1 qkv conv (bf16 MXU, f32 accumulate) ----------------
    qkv = jnp.dot(xn.astype(jnp.bfloat16), wqkv_ref[...],
                  preferred_element_type=jnp.float32) + bqkv_ref[...]   # (T, 3C) f32
    qkv_ref[...] = qkv.astype(jnp.bfloat16)                   # bound live range in VMEM

    # ---------------- multi-head attention, query-tiled ----------------
    ch = C // num_heads
    # TODO(synk): for v5e configs with ch < 128, padding each head to 128 lanes
    # (zero cols in wqkv / zero rows in wproj) would make slices tile-aligned.
    for h in range(num_heads):
        q0 = h * ch
        k0 = C + h * ch
        v0 = 2 * C + h * ch
        kh = qkv_ref[:, k0:k0 + ch]                           # (T, ch) bf16
        vh = qkv_ref[:, v0:v0 + ch]                           # (T, ch) bf16
        for t0 in range(0, T, q_tile):
            qh = qkv_ref[t0:t0 + q_tile, q0:q0 + ch]          # (tq, ch) bf16 (pre-scaled)
            s = lax.dot_general(qh, kh, dn_last,
                                preferred_element_type=jnp.float32)      # (tq, T) f32
            s = s - jnp.max(s, axis=-1, keepdims=True)
            p = jnp.exp(s)
            # EUP reciprocal folded into the (tq, ch) output instead of a (tq, T) divide
            inv_l = pl.reciprocal(jnp.sum(p, axis=-1, keepdims=True), approx=True)
            a_t = jnp.dot(p.astype(jnp.bfloat16), vh,
                          preferred_element_type=jnp.float32)            # (tq, ch) f32
            a_ref[t0:t0 + q_tile, q0:q0 + ch] = (a_t * inv_l).astype(a_ref.dtype)

    # ---------------- single output projection (K = C) + residual ----------------
    h_out = jnp.dot(a_ref[...], wproj_ref[...], preferred_element_type=jnp.float32)  # (T, C)
    o_ref[...] = (x + h_out + bproj_ref[...]).astype(o_ref.dtype)


def attention_block_forward(x_nchw, gamma, beta, wqkv, bqkv, wproj, bproj,
                            num_heads=1, num_groups=32, eps=1e-5):
    """AttentionBlock forward for NCHW input x and Conv1d-style parameters."""
    B, C, H, W = x_nchw.shape
    T = H * W
    assert C % num_groups == 0, "GroupNorm(32, C) requires C % 32 == 0"
    assert C % num_heads == 0
    ch = C // num_heads
    G = num_groups
    cg = C // G

    # (B, C, T) -> (B, T, C): channels on the 128-lane axis inside the kernel.
    # TODO(synk): the layout swap still runs in XLA outside the kernel; an
    # in-kernel (C,T)<->(T,C) swap would remove one HBM round-trip of x/out.
    x_tc = jnp.transpose(x_nchw.reshape(B, C, T), (0, 2, 1))

    # group membership one-hot matrix: gmat[c, g] = 1 iff channel c is in group g
    gmat = (jnp.arange(C)[:, None] // cg == jnp.arange(G)[None, :]).astype(jnp.float32)

    # fold the total softmax scale (ch^-0.25 applied to q and k == ch^-0.5 on q)
    # into the q-columns of the qkv conv weight / bias.
    qk_scale = 1.0 / math.sqrt(float(ch))
    wqkv_t = jnp.transpose(wqkv).astype(jnp.float32)          # (C, 3C)
    wqkv_t = wqkv_t.at[:, :C].multiply(qk_scale)
    bqkv_s = bqkv.astype(jnp.float32).at[:C].multiply(qk_scale)

    wqkv_bf = wqkv_t.astype(jnp.bfloat16)                     # bf16 MXU operands
    wproj_bf = jnp.transpose(wproj).astype(jnp.bfloat16)      # (C, C)
    bqkv2 = bqkv_s.reshape(1, 3 * C)
    bproj2 = bproj.reshape(1, C).astype(jnp.float32)
    gamma2 = gamma.reshape(1, C).astype(jnp.float32)
    beta2 = beta.reshape(1, C).astype(jnp.float32)

    # query tile bounds the live (tq, T) score block at large T
    if T % 256 == 0:
        q_tile = 256
    elif T % 128 == 0:
        q_tile = 128
    else:
        q_tile = T

    kernel = functools.partial(attention_block_kernel,
                               num_heads=num_heads, eps=float(eps),
                               inv_count=1.0 / float(cg * T), q_tile=q_tile)

    # size scoped VMEM from the actual footprint (double-buffered blocks +
    # resident weights + scratch + live score block), with 2x headroom.
    est = (4 * T * C * 4                                   # x in + out, double buffered
           + 2 * C * 3 * C * 2 + 2 * C * C * 2             # bf16 weights (db)
           + 2 * (C * G * 4 + 2 * 3 * C * 4 + 2 * C * 4)   # gmat + small vectors
           + T * 3 * C * 2 + T * C * 2                     # qkv / attn scratch
           + 2 * q_tile * T * 4                            # live score + exp block
           + 3 * T * C * 4)                                # live f32 temporaries
    vmem_limit = int(min(max(2 * est, 32 * 1024 * 1024), 64 * 1024 * 1024))

    out_tc = pl.pallas_call(
        kernel,
        out_shape=jax.ShapeDtypeStruct((B, T, C), x_nchw.dtype),
        grid_spec=pltpu.PrefetchScalarGridSpec(
            num_scalar_prefetch=0,
            grid=(B,),
            in_specs=[
                pl.BlockSpec((None, T, C), lambda b: (b, 0, 0)),    # x
                pl.BlockSpec((1, C), lambda b: (0, 0)),             # gamma
                pl.BlockSpec((1, C), lambda b: (0, 0)),             # beta
                pl.BlockSpec((C, G), lambda b: (0, 0)),             # group matrix
                pl.BlockSpec((C, 3 * C), lambda b: (0, 0)),         # W_qkv^T (bf16)
                pl.BlockSpec((1, 3 * C), lambda b: (0, 0)),         # b_qkv
                pl.BlockSpec((C, C), lambda b: (0, 0)),             # W_proj^T (bf16)
                pl.BlockSpec((1, C), lambda b: (0, 0)),             # b_proj
            ],
            out_specs=pl.BlockSpec((None, T, C), lambda b: (b, 0, 0)),
            scratch_shapes=[
                pltpu.VMEM((T, 3 * C), jnp.bfloat16),   # qkv
                pltpu.VMEM((T, C), jnp.bfloat16),       # concatenated head outputs
            ],
        ),
        compiler_params=pltpu.CompilerParams(
            dimension_semantics=("parallel",),
            vmem_limit_bytes=vmem_limit),
    )(x_tc, gamma2, beta2, gmat, wqkv_bf, bqkv2, wproj_bf, bproj2)

    # back to the PyTorch layout
    return jnp.transpose(out_tc, (0, 2, 1)).reshape(B, C, H, W)


def reference_forward(x, gamma, beta, wqkv, bqkv, wproj, bproj,
                      num_heads=1, num_groups=32, eps=1e-5):
    """Pure-JAX f32 reference: GroupNorm32 -> 1x1 qkv conv -> attention -> proj -> residual."""
    B, C, H, W = x.shape
    T = H * W
    hi = lax.Precision.HIGHEST
    xf = x.reshape(B, C, T).astype(jnp.float32)

    G = num_groups
    xg = xf.reshape(B, G, C // G, T)
    mean = jnp.mean(xg, axis=(2, 3), keepdims=True)
    var = jnp.mean((xg - mean) ** 2, axis=(2, 3), keepdims=True)
    xn = ((xg - mean) * lax.rsqrt(var + eps)).reshape(B, C, T)
    xn = xn * gamma.reshape(1, C, 1) + beta.reshape(1, C, 1)

    qkv = jnp.einsum('oc,bct->bot', wqkv, xn, precision=hi) + bqkv.reshape(1, 3 * C, 1)
    q, k, v = jnp.split(qkv, 3, axis=1)
    nh = num_heads
    ch = C // nh
    q = q.reshape(B * nh, ch, T)
    k = k.reshape(B * nh, ch, T)
    v = v.reshape(B * nh, ch, T)
    scale = 1.0 / math.sqrt(math.sqrt(ch))
    wgt = jnp.einsum('bct,bcs->bts', q * scale, k * scale, precision=hi)
    wgt = jax.nn.softmax(wgt, axis=-1)
    a = jnp.einsum('bts,bcs->bct', wgt, v, precision=hi).reshape(B, C, T)

    hout = jnp.einsum('oc,bct->bot', wproj, a, precision=hi) + bproj.reshape(1, C, 1)
    return (xf + hout).reshape(B, C, H, W)


if __name__ == "__main__":
    key = jax.random.PRNGKey(0)
    ks = jax.random.split(key, 7)

    # GroupNorm(32, C) forces C to be a multiple of 32; keep spatial small.
    B, C, H, W = 2, 128, 8, 8       # T = 64
    num_heads = 2

    x = jax.random.normal(ks[0], (B, C, H, W), dtype=jnp.float32)
    gamma = 1.0 + 0.1 * jax.random.normal(ks[1], (C,), dtype=jnp.float32)
    beta = 0.1 * jax.random.normal(ks[2], (C,), dtype=jnp.float32)
    wqkv = 0.1 * jax.random.normal(ks[3], (3 * C, C), dtype=jnp.float32)   # Conv1d(C,3C,1) weight
    bqkv = 0.1 * jax.random.normal(ks[4], (3 * C,), dtype=jnp.float32)
    # NOTE: the module zero-initializes proj_out (zero_module); nonzero values here
    # exercise the full compute path with identical forward-pass semantics.
    wproj = 0.05 * jax.random.normal(ks[5], (C, C), dtype=jnp.float32)     # Conv1d(C,C,1) weight
    bproj = 0.05 * jax.random.normal(ks[6], (C,), dtype=jnp.float32)

    out = attention_block_forward(x, gamma, beta, wqkv, bqkv, wproj, bproj,
                                  num_heads=num_heads)
    out = jax.block_until_ready(out)

    ref = jax.block_until_ready(
        reference_forward(x, gamma, beta, wqkv, bqkv, wproj, bproj,
                          num_heads=num_heads))

    assert out.shape == (B, C, H, W), out.shape
    max_err = float(jnp.max(jnp.abs(out - ref)))
    # bf16 MXU operands + approx reciprocal vs. an all-f32 reference
    assert jnp.allclose(out, ref, atol=2e-2, rtol=2e-2), f"mismatch vs reference: {max_err}"

    print("KERNEL_OK")
</pallas_src>

<mosaic_0001>
module attributes {stable_mosaic.version = 11 : i64} {
  func.func @attention_block_kernel(%arg0: i32, %arg1: memref<1x64x128xf32, #tpu.memory_space<vmem>>, %arg2: memref<1x128xf32, #tpu.memory_space<vmem>>, %arg3: memref<1x128xf32, #tpu.memory_space<vmem>>, %arg4: memref<128x32xf32, #tpu.memory_space<vmem>>, %arg5: memref<128x384xbf16, #tpu.memory_space<vmem>>, %arg6: memref<1x384xf32, #tpu.memory_space<vmem>>, %arg7: memref<128x128xbf16, #tpu.memory_space<vmem>>, %arg8: memref<1x128xf32, #tpu.memory_space<vmem>>, %arg9: memref<1x64x128xf32, #tpu.memory_space<vmem>>, %arg10: memref<64x384xbf16, #tpu.memory_space<vmem>>, %arg11: memref<64x128xbf16, #tpu.memory_space<vmem>>) attributes {dimension_semantics = [#tpu.dimension_semantics<parallel>], iteration_bounds = array<i64: 2>, scalar_prefetch = 0 : i64, scratch_operands = 2 : i64, tpu.core_type = #tpu.core_type<tc>, window_params = [{transform_indices = @transform_0, window_bounds = array<i64: 1, 64, 128>}, {pipeline_mode = #tpu.pipeline_mode<synchronous>, transform_indices = @transform_1, window_bounds = array<i64: 1, 128>}, {pipeline_mode = #tpu.pipeline_mode<synchronous>, transform_indices = @transform_2, window_bounds = array<i64: 1, 128>}, {pipeline_mode = #tpu.pipeline_mode<synchronous>, transform_indices = @transform_3, window_bounds = array<i64: 128, 32>}, {pipeline_mode = #tpu.pipeline_mode<synchronous>, transform_indices = @transform_4, window_bounds = array<i64: 128, 384>}, {pipeline_mode = #tpu.pipeline_mode<synchronous>, transform_indices = @transform_5, window_bounds = array<i64: 1, 384>}, {pipeline_mode = #tpu.pipeline_mode<synchronous>, transform_indices = @transform_6, window_bounds = array<i64: 128, 128>}, {pipeline_mode = #tpu.pipeline_mode<synchronous>, transform_indices = @transform_7, window_bounds = array<i64: 1, 128>}, {transform_indices = @transform_8, window_bounds = array<i64: 1, 64, 128>}]} {
    %c0 = arith.constant 0 : index
    %c0_0 = arith.constant 0 : index
    %c0_1 = arith.constant 0 : index
    %0 = vector.load %arg1[%c0, %c0_0, %c0_1] : memref<1x64x128xf32, #tpu.memory_space<vmem>>, vector<1x64x128xf32>
    %1 = vector.shape_cast %0 : vector<1x64x128xf32> to vector<64x128xf32>
    %c0_2 = arith.constant 0 : index
    %c0_3 = arith.constant 0 : index
    %2 = vector.load %arg4[%c0_2, %c0_3] : memref<128x32xf32, #tpu.memory_space<vmem>>, vector<128x32xf32>
    %cst = arith.constant dense<0.000000e+00> : vector<128xf32>
    %3 = vector.multi_reduction <add>, %1, %cst [0] : vector<64x128xf32> to vector<128xf32>
    %4 = vector.shape_cast %3 : vector<128xf32> to vector<1x128xf32>
    %5 = arith.mulf %1, %1 : vector<64x128xf32>
    %cst_4 = arith.constant dense<0.000000e+00> : vector<128xf32>
    %6 = vector.multi_reduction <add>, %5, %cst_4 [0] : vector<64x128xf32> to vector<128xf32>
    %7 = vector.shape_cast %6 : vector<128xf32> to vector<1x128xf32>
    %cst_5 = arith.constant dense<0.000000e+00> : vector<1x32xf32>
    %8 = tpu.matmul %4, %2, %cst_5 {dimension_numbers = #tpu.dot_dimension_numbers<[1], [0], [0], [1], [0, 0, 1, 1], [], []>} : vector<1x128xf32>, vector<128x32xf32>, vector<1x32xf32> -> vector<1x32xf32>
    %cst_6 = arith.constant 3.906250e-03 : f32
    %9 = vector.broadcast %cst_6 : f32 to vector<1x32xf32>
    %10 = arith.mulf %8, %9 : vector<1x32xf32>
    %cst_7 = arith.constant dense<0.000000e+00> : vector<1x32xf32>
    %11 = tpu.matmul %7, %2, %cst_7 {dimension_numbers = #tpu.dot_dimension_numbers<[1], [0], [0], [1], [0, 0, 1, 1], [], []>} : vector<1x128xf32>, vector<128x32xf32>, vector<1x32xf32> -> vector<1x32xf32>
    %cst_8 = arith.constant 3.906250e-03 : f32
    %12 = vector.broadcast %cst_8 : f32 to vector<1x32xf32>
    %13 = arith.mulf %11, %12 : vector<1x32xf32>
    %14 = arith.mulf %10, %10 : vector<1x32xf32>
    %15 = arith.subf %13, %14 : vector<1x32xf32>
    %cst_9 = arith.constant 9.99999974E-6 : f32
    %16 = vector.broadcast %cst_9 : f32 to vector<1x32xf32>
    %17 = arith.addf %15, %16 : vector<1x32xf32>
    %18 = math.rsqrt %17 : vector<1x32xf32>
    %cst_10 = arith.constant dense<0.000000e+00> : vector<1x128xf32>
    %19 = tpu.matmul %10, %2, %cst_10 {dimension_numbers = #tpu.dot_dimension_numbers<[1], [1], [0], [0], [0, 0, 1, 0], [], []>} : vector<1x32xf32>, vector<128x32xf32>, vector<1x128xf32> -> vector<1x128xf32>
    %cst_11 = arith.constant dense<0.000000e+00> : vector<1x128xf32>
    %20 = tpu.matmul %18, %2, %cst_11 {dimension_numbers = #tpu.dot_dimension_numbers<[1], [1], [0], [0], [0, 0, 1, 0], [], []>} : vector<1x32xf32>, vector<128x32xf32>, vector<1x128xf32> -> vector<1x128xf32>
    %c0_12 = arith.constant 0 : index
    %c0_13 = arith.constant 0 : index
    %21 = vector.load %arg2[%c0_12, %c0_13] : memref<1x128xf32, #tpu.memory_space<vmem>>, vector<1x128xf32>
    %22 = arith.mulf %20, %21 : vector<1x128xf32>
    %c0_14 = arith.constant 0 : index
    %c0_15 = arith.constant 0 : index
    %23 = vector.load %arg3[%c0_14, %c0_15] : memref<1x128xf32, #tpu.memory_space<vmem>>, vector<1x128xf32>
    %24 = arith.mulf %19, %22 : vector<1x128xf32>
    %25 = arith.subf %23, %24 : vector<1x128xf32>
    %26 = vector.broadcast %22 : vector<1x128xf32> to vector<64x128xf32>
    %27 = arith.mulf %1, %26 : vector<64x128xf32>
    %28 = vector.broadcast %25 : vector<1x128xf32> to vector<64x128xf32>
    %29 = arith.addf %27, %28 : vector<64x128xf32>
    %30 = arith.truncf %29 : vector<64x128xf32> to vector<64x128xbf16>
    %c0_16 = arith.constant 0 : index
    %c0_17 = arith.constant 0 : index
    %31 = vector.load %arg5[%c0_16, %c0_17] : memref<128x384xbf16, #tpu.memory_space<vmem>>, vector<128x384xbf16>
    %cst_18 = arith.constant dense<0.000000e+00> : vector<64x384xf32>
    %32 = tpu.matmul %30, %31, %cst_18 {dimension_numbers = #tpu.dot_dimension_numbers<[1], [0], [0], [1], [0, 0, 1, 1], [], []>} : vector<64x128xbf16>, vector<128x384xbf16>, vector<64x384xf32> -> vector<64x384xf32>
    %c0_19 = arith.constant 0 : index
    %c0_20 = arith.constant 0 : index
    %33 = vector.load %arg6[%c0_19, %c0_20] : memref<1x384xf32, #tpu.memory_space<vmem>>, vector<1x384xf32>
    %34 = vector.broadcast %33 : vector<1x384xf32> to vector<64x384xf32>
    %35 = arith.addf %32, %34 : vector<64x384xf32>
    %36 = arith.truncf %35 : vector<64x384xf32> to vector<64x384xbf16>
    %c0_21 = arith.constant 0 : index
    %c0_22 = arith.constant 0 : index
    %37 = vector.load %arg10[%c0_21, %c0_22] : memref<64x384xbf16, #tpu.memory_space<vmem>>, vector<64x384xbf16>
    tpu.vector_store %arg10[%c0_21, %c0_22], %36 {strides = array<i32>} : memref<64x384xbf16, #tpu.memory_space<vmem>>, vector<64x384xbf16>,
    %c0_23 = arith.constant 0 : index
    %c128 = arith.constant 128 : index
    %38 = vector.load %arg10[%c0_23, %c128] : memref<64x384xbf16, #tpu.memory_space<vmem>>, vector<64x64xbf16>
    %c0_24 = arith.constant 0 : index
    %c256 = arith.constant 256 : index
    %39 = vector.load %arg10[%c0_24, %c256] : memref<64x384xbf16, #tpu.memory_space<vmem>>, vector<64x64xbf16>
    %c0_25 = arith.constant 0 : index
    %c0_26 = arith.constant 0 : index
    %40 = vector.load %arg10[%c0_25, %c0_26] : memref<64x384xbf16, #tpu.memory_space<vmem>>, vector<64x64xbf16>
    %cst_27 = arith.constant dense<0.000000e+00> : vector<64x64xf32>
    %41 = tpu.matmul %40, %38, %cst_27 {dimension_numbers = #tpu.dot_dimension_numbers<[1], [1], [0], [0], [0, 0, 1, 0], [], []>} : vector<64x64xbf16>, vector<64x64xbf16>, vector<64x64xf32> -> vector<64x64xf32>
    %cst_28 = arith.constant dense<0xFF800000> : vector<64xf32>
    %42 = vector.multi_reduction <maximumf>, %41, %cst_28 [1] : vector<64x64xf32> to vector<64xf32>
    %43 = vector.shape_cast %42 : vector<64xf32> to vector<64x1xf32>
    %44 = vector.broadcast %43 : vector<64x1xf32> to vector<64x64xf32>
    %45 = arith.subf %41, %44 : vector<64x64xf32>
    %46 = math.exp %45 : vector<64x64xf32>
    %cst_29 = arith.constant dense<0.000000e+00> : vector<64xf32>
    %47 = vector.multi_reduction <add>, %46, %cst_29 [1] : vector<64x64xf32> to vector<64xf32>
    %48 = vector.shape_cast %47 : vector<64xf32> to vector<64x1xf32>
    %49 = tpu.reciprocal %48 {approx = true} : vector<64x1xf32> -> vector<64x1xf32>
    %50 = arith.truncf %46 : vector<64x64xf32> to vector<64x64xbf16>
    %cst_30 = arith.constant dense<0.000000e+00> : vector<64x64xf32>
    %51 = tpu.matmul %50, %39, %cst_30 {dimension_numbers = #tpu.dot_dimension_numbers<[1], [0], [0], [1], [0, 0, 1, 1], [], []>} : vector<64x64xbf16>, vector<64x64xbf16>, vector<64x64xf32> -> vector<64x64xf32>
    %52 = vector.broadcast %49 : vector<64x1xf32> to vector<64x64xf32>
    %53 = arith.mulf %51, %52 : vector<64x64xf32>
    %54 = arith.truncf %53 : vector<64x64xf32> to vector<64x64xbf16>
    %c0_31 = arith.constant 0 : index
    %c0_32 = arith.constant 0 : index
    %55 = vector.load %arg11[%c0_31, %c0_32] : memref<64x128xbf16, #tpu.memory_space<vmem>>, vector<64x64xbf16>
    tpu.vector_store %arg11[%c0_31, %c0_32], %54 {strides = array<i32>} : memref<64x128xbf16, #tpu.memory_space<vmem>>, vector<64x64xbf16>,
    %c0_33 = arith.constant 0 : index
    %c192 = arith.constant 192 : index
    %56 = vector.load %arg10[%c0_33, %c192] : memref<64x384xbf16, #tpu.memory_space<vmem>>, vector<64x64xbf16>
    %c0_34 = arith.constant 0 : index
    %c320 = arith.constant 320 : index
    %57 = vector.load %arg10[%c0_34, %c320] : memref<64x384xbf16, #tpu.memory_space<vmem>>, vector<64x64xbf16>
    %c0_35 = arith.constant 0 : index
    %c64 = arith.constant 64 : index
    %58 = vector.load %arg10[%c0_35, %c64] : memref<64x384xbf16, #tpu.memory_space<vmem>>, vector<64x64xbf16>
    %cst_36 = arith.constant dense<0.000000e+00> : vector<64x64xf32>
    %59 = tpu.matmul %58, %56, %cst_36 {dimension_numbers = #tpu.dot_dimension_numbers<[1], [1], [0], [0], [0, 0, 1, 0], [], []>} : vector<64x64xbf16>, vector<64x64xbf16>, vector<64x64xf32> -> vector<64x64xf32>
    %cst_37 = arith.constant dense<0xFF800000> : vector<64xf32>
    %60 = vector.multi_reduction <maximumf>, %59, %cst_37 [1] : vector<64x64xf32> to vector<64xf32>
    %61 = vector.shape_cast %60 : vector<64xf32> to vector<64x1xf32>
    %62 = vector.broadcast %61 : vector<64x1xf32> to vector<64x64xf32>
    %63 = arith.subf %59, %62 : vector<64x64xf32>
    %64 = math.exp %63 : vector<64x64xf32>
    %cst_38 = arith.constant dense<0.000000e+00> : vector<64xf32>
    %65 = vector.multi_reduction <add>, %64, %cst_38 [1] : vector<64x64xf32> to vector<64xf32>
    %66 = vector.shape_cast %65 : vector<64xf32> to vector<64x1xf32>
    %67 = tpu.reciprocal %66 {approx = true} : vector<64x1xf32> -> vector<64x1xf32>
    %68 = arith.truncf %64 : vector<64x64xf32> to vector<64x64xbf16>
    %cst_39 = arith.constant dense<0.000000e+00> : vector<64x64xf32>
    %69 = tpu.matmul %68, %57, %cst_39 {dimension_numbers = #tpu.dot_dimension_numbers<[1], [0], [0], [1], [0, 0, 1, 1], [], []>} : vector<64x64xbf16>, vector<64x64xbf16>, vector<64x64xf32> -> vector<64x64xf32>
    %70 = vector.broadcast %67 : vector<64x1xf32> to vector<64x64xf32>
    %71 = arith.mulf %69, %70 : vector<64x64xf32>
    %72 = arith.truncf %71 : vector<64x64xf32> to vector<64x64xbf16>
    %c0_40 = arith.constant 0 : index
    %c64_41 = arith.constant 64 : index
    %73 = vector.load %arg11[%c0_40, %c64_41] : memref<64x128xbf16, #tpu.memory_space<vmem>>, vector<64x64xbf16>
    tpu.vector_store %arg11[%c0_40, %c64_41], %72 {strides = array<i32>} : memref<64x128xbf16, #tpu.memory_space<vmem>>, vector<64x64xbf16>,
    %c0_42 = arith.constant 0 : index
    %c0_43 = arith.constant 0 : index
    %74 = vector.load %arg11[%c0_42, %c0_43] : memref<64x128xbf16, #tpu.memory_space<vmem>>, vector<64x128xbf16>
    %c0_44 = arith.constant 0 : index
    %c0_45 = arith.constant 0 : index
    %75 = vector.load %arg7[%c0_44, %c0_45] : memref<128x128xbf16, #tpu.memory_space<vmem>>, vector<128x128xbf16>
    %cst_46 = arith.constant dense<0.000000e+00> : vector<64x128xf32>
    %76 = tpu.matmul %74, %75, %cst_46 {dimension_numbers = #tpu.dot_dimension_numbers<[1], [0], [0], [1], [0, 0, 1, 1], [], []>} : vector<64x128xbf16>, vector<128x128xbf16>, vector<64x128xf32> -> vector<64x128xf32>
    %77 = arith.addf %1, %76 : vector<64x128xf32>
    %c0_47 = arith.constant 0 : index
    %c0_48 = arith.constant 0 : index
    %78 = vector.load %arg8[%c0_47, %c0_48] : memref<1x128xf32, #tpu.memory_space<vmem>>, vector<1x128xf32>
    %79 = vector.broadcast %78 : vector<1x128xf32> to vector<64x128xf32>
    %80 = arith.addf %77, %79 : vector<64x128xf32>
    %c0_49 = arith.constant 0 : index
    %c0_50 = arith.constant 0 : index
    %c0_51 = arith.constant 0 : index
    %81 = vector.load %arg9[%c0_49, %c0_50, %c0_51] : memref<1x64x128xf32, #tpu.memory_space<vmem>>, vector<1x64x128xf32>
    %82 = vector.shape_cast %81 : vector<1x64x128xf32> to vector<64x128xf32>
    %83 = vector.shape_cast %80 : vector<64x128xf32> to vector<1x64x128xf32>
    tpu.vector_store %arg9[%c0_49, %c0_50, %c0_51], %83 {strides = array<i32>} : memref<1x64x128xf32, #tpu.memory_space<vmem>>, vector<1x64x128xf32>,
    return
  }
  func.func @transform_0(%arg0: i32) -> (i32, i32, i32) {
    %c0_i32 = arith.constant 0 : i32
    %c0_i32_0 = arith.constant 0 : i32
    %c0_i32_1 = arith.constant 0 : i32
    return %arg0, %c0_i32, %c0_i32_0 : i32, i32, i32
  }
  func.func @transform_1(%arg0: i32) -> (i32, i32) {
    %c0_i32 = arith.constant 0 : i32
    %c0_i32_0 = arith.constant 0 : i32
    %c0_i32_1 = arith.constant 0 : i32
    return %c0_i32, %c0_i32_0 : i32, i32
  }
  func.func @transform_2(%arg0: i32) -> (i32, i32) {
    %c0_i32 = arith.constant 0 : i32
    %c0_i32_0 = arith.constant 0 : i32
    %c0_i32_1 = arith.constant 0 : i32
    return %c0_i32, %c0_i32_0 : i32, i32
  }
  func.func @transform_3(%arg0: i32) -> (i32, i32) {
    %c0_i32 = arith.constant 0 : i32
    %c0_i32_0 = arith.constant 0 : i32
    %c0_i32_1 = arith.constant 0 : i32
    return %c0_i32, %c0_i32_0 : i32, i32
  }
  func.func @transform_4(%arg0: i32) -> (i32, i32) {
    %c0_i32 = arith.constant 0 : i32
    %c0_i32_0 = arith.constant 0 : i32
    %c0_i32_1 = arith.constant 0 : i32
    return %c0_i32, %c0_i32_0 : i32, i32
  }
  func.func @transform_5(%arg0: i32) -> (i32, i32) {
    %c0_i32 = arith.constant 0 : i32
    %c0_i32_0 = arith.constant 0 : i32
    %c0_i32_1 = arith.constant 0 : i32
    return %c0_i32, %c0_i32_0 : i32, i32
  }
  func.func @transform_6(%arg0: i32) -> (i32, i32) {
    %c0_i32 = arith.constant 0 : i32
    %c0_i32_0 = arith.constant 0 : i32
    %c0_i32_1 = arith.constant 0 : i32
    return %c0_i32, %c0_i32_0 : i32, i32
  }
  func.func @transform_7(%arg0: i32) -> (i32, i32) {
    %c0_i32 = arith.constant 0 : i32
    %c0_i32_0 = arith.constant 0 : i32
    %c0_i32_1 = arith.constant 0 : i32
    return %c0_i32, %c0_i32_0 : i32, i32
  }
  func.func @transform_8(%arg0: i32) -> (i32, i32, i32) {
    %c0_i32 = arith.constant 0 : i32
    %c0_i32_0 = arith.constant 0 : i32
    %c0_i32_1 = arith.constant 0 : i32
    return %arg0, %c0_i32, %c0_i32_0 : i32, i32, i32
  }
}

</mosaic_0001>

<llo_original>
// kernel: tpu_custom_call.1
$region0: #{tpu_custom_call.1}
  #allocation0 [shape = 'u32[]', space=smem, size = 0x4, offset = 0x4, fixed_abs, tag = 'smem constant byte address 0x4 - core index']
  #allocation1 [shape = 'u32[144,128]{1,0:T(1,128)}', space=vmem, size = 0x12000, scoped, tag = 'internal scratch']
  #allocation2 [shape = 'bf16[64,384]{1,0:T(16,128)(2,1)}', space=vmem, size = 0xc000, scoped, tag = 'scratch operand']
  #allocation3 [shape = 'bf16[64,128]{1,0:T(16,128)(2,1)}', space=vmem, size = 0x4000, scoped, tag = 'scratch operand']
  %s0 = inlined_call_operand.vmem [shape: f32[2,64,128], index: 0, kind: input, shape index: {}]
  %s1 = inlined_call_operand.vmem [shape: f32[1,128], index: 1, kind: input, shape index: {}]
  %s2 = inlined_call_operand.vmem [shape: f32[1,128], index: 2, kind: input, shape index: {}]
  %s3 = inlined_call_operand.vmem [shape: f32[128,32], index: 3, kind: input, shape index: {}]
  %s4 = inlined_call_operand.hbm [shape: bf16[128,384], index: 4, kind: input, shape index: {}]
  %s5 = inlined_call_operand.vmem [shape: f32[1,384], index: 5, kind: input, shape index: {}]
  %s6 = inlined_call_operand.hbm [shape: bf16[128,128], index: 6, kind: input, shape index: {}]
  %s7 = inlined_call_operand.vmem [shape: f32[1,128], index: 7, kind: input, shape index: {}]
  %s8 = inlined_call_operand.hbm [shape: f32[2,64,128], index: 8, kind: output, shape index: {}]
  %s9 = sld [smem:[#allocation0]]
  $region73: #{tpu_custom_call.1} parent=0
    _
  %s11 = ssub.s32 1, %s9
  %s12 = scalar_select 0, %s11, %s9
  $region1: #{tpu_custom_call.1} parent=0
    #allocation4 [shape = 'u8[98304]{0}', space=vmem, size = 0x18000, scoped, tag = 'input window, operand 4, single buffered']
    #allocation5 [shape = 's32[2]{0}', space=sflag, size = 0x8, scoped, tag = 'scoped memory for tpu_custom_call.1']
    #allocation6 [shape = 's32[2]{0}', space=sflag, size = 0x8, scoped, tag = 'scoped memory for tpu_custom_call.1']
    #allocation7 [shape = 'u8[32768]{0}', space=vmem, size = 0x8000, scoped, tag = 'input window, operand 6, single buffered']
    #allocation8 [shape = 's32[1]{0}', space=sflag, size = 0x4, scoped, tag = 'scoped memory for tpu_custom_call.1']
    #allocation9 [shape = 'u8[65536]{0}', space=vmem, size = 0x10000, scoped, tag = 'output window, operand 0']
    %13 = vsyncpa [#allocation5], 0
    %14 = vsyncpa [#allocation8], 0
    %15 = vsyncpa [#allocation6], 0
    %s16 = scalar_lea.sflag [#allocation6], 1
    %17 = vsyncpa %s16, 0
    loop: start=0, step=1, limit=4
    $region2: #{tpu_custom_call.1} parent=1 // loop_pre_header
      _
    $region3: #{tpu_custom_call.1} parent=1 // loop_header
      %s19 = sphi 0, %s23
      %p20 = scmp.ge.s32.totalorder %s19, 4
      %s29 = sphi 0, %s31
      %s32 = sphi 0, %s29
      %s33 = sphi 0, %s32
      %s49 = sphi 0, %s33
      %s53 = sphi 0, %s53
      %s55 = sphi 0, %s53
      %s56 = sphi 0, %s55
      %s70 = sphi 0, %s56
      %s74 = sphi 0, %s74
      %s76 = sphi 0, %s74
      %s77 = sphi 0, %s76
      %s91 = sphi 0, %s77
      %s95 = sphi 0, %s95
      %s97 = sphi 0, %s95
      %s98 = sphi 0, %s97
      %s112 = sphi 0, %s98
      %s116 = sphi 0, %s116
      %s118 = sphi 0, %s116
      %s119 = sphi 0, %s118
      %s133 = sphi 0, %s119
      %s137 = sphi 0, %s137
      %s139 = sphi 0, %s137
      %s140 = sphi 0, %s139
      %s154 = sphi 0, %s140
      %s158 = sphi 0, %s158
      %s160 = sphi 0, %s158
      %s161 = sphi 0, %s160
      %s175 = sphi 0, %s161
      %s179 = sphi 0, %s179
      %s181 = sphi 0, %s179
      %s182 = sphi 0, %s181
      %s196 = sphi 0, %s182
      %s202 = sphi 0, %s204
      %s205 = sphi 0, %s202
      %s206 = sphi 0, %s205
      %s222 = sphi 0, %s206
    $region4: #{tpu_custom_call.1} parent=1 // loop_header_branch
      %22 = sbr.rel (%p20) target = $region8
    $region5: #{tpu_custom_call.1} parent=1 // loop_body
      %s24 = ssub.s32 %s19, 1
      %s25 = ssub.s32 %s19, 2
      %s26 = sadd.s32 %s19, 1
      %s27 = ssub.s32 %s19, %s26
      %p28 = scmp.eq.s32.totalorder %s27, 0
      %s30 = sadd.s32 %s29, 1
      %s31 = scalar_select %p28, %s29, %s30
      %p34 = pneg %p28
      %p35 = scmp.eq.s32.totalorder %s19, 1
      %p36 = por %p34, %p35
      %p37 = scmp.ne.s32.totalorder %s29, %s32
      %p38 = scmp.eq.s32.totalorder %s19, 0
      %p39 = por %p37, %p38
      %p40 = scmp.ne.s32.totalorder %s29, %s32
      %p41 = scmp.eq.s32.totalorder %s24, 1
      %p42 = por %p40, %p41
      %p43 = scmp.ne.s32.totalorder %s32, %s33
      %p44 = scmp.eq.s32.totalorder %s24, 0
      %p45 = por %p43, %p44
      %p46 = scmp.ne.s32.totalorder %s32, %s33
      %p47 = scmp.eq.s32.totalorder %s25, 1
      %p48 = por %p46, %p47
      %p50 = scmp.ne.s32.totalorder %s33, %s49
      %p51 = scmp.eq.s32.totalorder %s25, 0
      %p52 = por %p50, %p51
      %s54 = sadd.s32 %s53, 1
      %p57 = scmp.eq.s32.totalorder %s19, 1
      %p58 = scmp.ne.s32.totalorder %s53, %s55
      %p59 = scmp.eq.s32.totalorder %s19, 0
      %p60 = por %p58, %p59
      %p61 = scmp.ne.s32.totalorder %s53, %s55
      %p62 = scmp.eq.s32.totalorder %s24, 1
      %p63 = por %p61, %p62
      %p64 = scmp.ne.s32.totalorder %s55, %s56
      %p65 = scmp.eq.s32.totalorder %s24, 0
      %p66 = por %p64, %p65
      %p67 = scmp.ne.s32.totalorder %s55, %s56
      %p68 = scmp.eq.s32.totalorder %s25, 1
      %p69 = por %p67, %p68
      %p71 = scmp.ne.s32.totalorder %s56, %s70
      %p72 = scmp.eq.s32.totalorder %s25, 0
      %p73 = por %p71, %p72
      %s75 = sadd.s32 %s74, 1
      %p78 = scmp.eq.s32.totalorder %s19, 1
      %p79 = scmp.ne.s32.totalorder %s74, %s76
      %p80 = scmp.eq.s32.totalorder %s19, 0
      %p81 = por %p79, %p80
      %p82 = scmp.ne.s32.totalorder %s74, %s76
      %p83 = scmp.eq.s32.totalorder %s24, 1
      %p84 = por %p82, %p83
      %p85 = scmp.ne.s32.totalorder %s76, %s77
      %p86 = scmp.eq.s32.totalorder %s24, 0
      %p87 = por %p85, %p86
      %p88 = scmp.ne.s32.totalorder %s76, %s77
      %p89 = scmp.eq.s32.totalorder %s25, 1
      %p90 = por %p88, %p89
      %p92 = scmp.ne.s32.totalorder %s77, %s91
      %p93 = scmp.eq.s32.totalorder %s25, 0
      %p94 = por %p92, %p93
      %s96 = sadd.s32 %s95, 1
      %p99 = scmp.eq.s32.totalorder %s19, 1
      %p100 = scmp.ne.s32.totalorder %s95, %s97
      %p101 = scmp.eq.s32.totalorder %s19, 0
      %p102 = por %p100, %p101
      %p103 = scmp.ne.s32.totalorder %s95, %s97
      %p104 = scmp.eq.s32.totalorder %s24, 1
      %p105 = por %p103, %p104
      %p106 = scmp.ne.s32.totalorder %s97, %s98
      %p107 = scmp.eq.s32.totalorder %s24, 0
      %p108 = por %p106, %p107
      %p109 = scmp.ne.s32.totalorder %s97, %s98
      %p110 = scmp.eq.s32.totalorder %s25, 1
      %p111 = por %p109, %p110
      %p113 = scmp.ne.s32.totalorder %s98, %s112
      %p114 = scmp.eq.s32.totalorder %s25, 0
      %p115 = por %p113, %p114
      %s117 = sadd.s32 %s116, 1
      %p120 = scmp.eq.s32.totalorder %s19, 1
      %p121 = scmp.ne.s32.totalorder %s116, %s118
      %p122 = scmp.eq.s32.totalorder %s19, 0
      %p123 = por %p121, %p122
      %p124 = scmp.ne.s32.totalorder %s116, %s118
      %p125 = scmp.eq.s32.totalorder %s24, 1
      %p126 = por %p124, %p125
      %p127 = scmp.ne.s32.totalorder %s118, %s119
      %p128 = scmp.eq.s32.totalorder %s24, 0
      %p129 = por %p127, %p128
      %p130 = scmp.ne.s32.totalorder %s118, %s119
      %p131 = scmp.eq.s32.totalorder %s25, 1
      %p132 = por %p130, %p131
      %p134 = scmp.ne.s32.totalorder %s119, %s133
      %p135 = scmp.eq.s32.totalorder %s25, 0
      %p136 = por %p134, %p135
      %s138 = sadd.s32 %s137, 1
      %p141 = scmp.eq.s32.totalorder %s19, 1
      %p142 = scmp.ne.s32.totalorder %s137, %s139
      %p143 = scmp.eq.s32.totalorder %s19, 0
      %p144 = por %p142, %p143
      %p145 = scmp.ne.s32.totalorder %s137, %s139
      %p146 = scmp.eq.s32.totalorder %s24, 1
      %p147 = por %p145, %p146
      %p148 = scmp.ne.s32.totalorder %s139, %s140
      %p149 = scmp.eq.s32.totalorder %s24, 0
      %p150 = por %p148, %p149
      %p151 = scmp.ne.s32.totalorder %s139, %s140
      %p152 = scmp.eq.s32.totalorder %s25, 1
      %p153 = por %p151, %p152
      %p155 = scmp.ne.s32.totalorder %s140, %s154
      %p156 = scmp.eq.s32.totalorder %s25, 0
      %p157 = por %p155, %p156
      %s159 = sadd.s32 %s158, 1
      %p162 = scmp.eq.s32.totalorder %s19, 1
      %p163 = scmp.ne.s32.totalorder %s158, %s160
      %p164 = scmp.eq.s32.totalorder %s19, 0
      %p165 = por %p163, %p164
      %p166 = scmp.ne.s32.totalorder %s158, %s160
      %p167 = scmp.eq.s32.totalorder %s24, 1
      %p168 = por %p166, %p167
      %p169 = scmp.ne.s32.totalorder %s160, %s161
      %p170 = scmp.eq.s32.totalorder %s24, 0
      %p171 = por %p169, %p170
      %p172 = scmp.ne.s32.totalorder %s160, %s161
      %p173 = scmp.eq.s32.totalorder %s25, 1
      %p174 = por %p172, %p173
      %p176 = scmp.ne.s32.totalorder %s161, %s175
      %p177 = scmp.eq.s32.totalorder %s25, 0
      %p178 = por %p176, %p177
      %s180 = sadd.s32 %s179, 1
      %p183 = scmp.eq.s32.totalorder %s19, 1
      %p184 = scmp.ne.s32.totalorder %s179, %s181
      %p185 = scmp.eq.s32.totalorder %s19, 0
      %p186 = por %p184, %p185
      %p187 = scmp.ne.s32.totalorder %s179, %s181
      %p188 = scmp.eq.s32.totalorder %s24, 1
      %p189 = por %p187, %p188
      %p190 = scmp.ne.s32.totalorder %s181, %s182
      %p191 = scmp.eq.s32.totalorder %s24, 0
      %p192 = por %p190, %p191
      %p193 = scmp.ne.s32.totalorder %s181, %s182
      %p194 = scmp.eq.s32.totalorder %s25, 1
      %p195 = por %p193, %p194
      %p197 = scmp.ne.s32.totalorder %s182, %s196
      %p198 = scmp.eq.s32.totalorder %s25, 0
      %p199 = por %p197, %p198
      %s200 = ssub.s32 %s19, %s26
      %p201 = scmp.eq.s32.totalorder %s200, 0
      %s203 = sadd.s32 %s202, 1
      %s204 = scalar_select %p201, %s202, %s203
      %p207 = pneg %p201
      %p208 = scmp.eq.s32.totalorder %s19, 1
      %p209 = por %p207, %p208
      %p210 = scmp.ne.s32.totalorder %s202, %s205
      %p211 = scmp.eq.s32.totalorder %s19, 0
      %p212 = por %p210, %p211
      %p213 = scmp.ne.s32.totalorder %s202, %s205
      %p214 = scmp.eq.s32.totalorder %s24, 1
      %p215 = por %p213, %p214
      %p216 = scmp.ne.s32.totalorder %s205, %s206
      %p217 = scmp.eq.s32.totalorder %s24, 0
      %p218 = por %p216, %p217
      %p219 = scmp.ne.s32.totalorder %s205, %s206
      %p220 = scmp.eq.s32.totalorder %s25, 1
      %p221 = por %p219, %p220
      %p223 = scmp.ne.s32.totalorder %s206, %s222
      %p224 = scmp.eq.s32.totalorder %s25, 0
      %p225 = por %p223, %p224
      %p226 = scmp.le.s32.totalorder 1, %s19
      %p227 = scmp.lt.s32.totalorder %s19, 3
      %p228 = pnand %p226, %p227
      %p229 = pneg %p228
      // Predicated region
      $region9: #{tpu_custom_call.1} parent=5 // pred_check
        _
      $region10: #{tpu_custom_call.1} parent=5 // pred_check_branch
        %231 = sbr.rel (%p228) target = $region12
      $region11: #{tpu_custom_call.1} parent=5 // pred_region
        %s232 = ssub.s32 %s19, 1
        // Predicated region
        $region13: #{tpu_custom_call.1} parent=11 // pred_check
          %p233 = pneg %p66
        $region14: #{tpu_custom_call.1} parent=11 // pred_check_branch
          %235 = sbr.rel (%p233) target = $region16
        $region15: #{tpu_custom_call.1} parent=11 // pred_region
          _
        $region16: #{tpu_custom_call.1} parent=11 // pred_fallthru
          _
        // Predicated region
        $region17: #{tpu_custom_call.1} parent=11 // pred_check
          %p236 = pneg %p87
        $region18: #{tpu_custom_call.1} parent=11 // pred_check_branch
          %238 = sbr.rel (%p236) target = $region20
        $region19: #{tpu_custom_call.1} parent=11 // pred_region
          _
        $region20: #{tpu_custom_call.1} parent=11 // pred_fallthru
          _
        // Predicated region
        $region21: #{tpu_custom_call.1} parent=11 // pred_check
          %p239 = pneg %p108
        $region22: #{tpu_custom_call.1} parent=11 // pred_check_branch
          %241 = sbr.rel (%p239) target = $region24
        $region23: #{tpu_custom_call.1} parent=11 // pred_region
          _
        $region24: #{tpu_custom_call.1} parent=11 // pred_fallthru
          _
        // Predicated region
        $region25: #{tpu_custom_call.1} parent=11 // pred_check
          %p242 = pneg %p129
        $region26: #{tpu_custom_call.1} parent=11 // pred_check_branch
          %244 = sbr.rel (%p242) target = $region28
        $region27: #{tpu_custom_call.1} parent=11 // pred_region
          %s246 = ssub.s32 3072, 3072
          %247 = vsyncadd [#allocation5], %s246
          %s248 = sshll.u32 [#allocation4], 4
          %s249 = int_to_ptr.vmem [resolvable:$true] %s248
          %254 = dma.hbm_to_vmem [thread:$0]  %s4, 3072, %s249, [#allocation5], 192, 192, 12
        $region28: #{tpu_custom_call.1} parent=11 // pred_fallthru
          _
        // Predicated region
        $region29: #{tpu_custom_call.1} parent=11 // pred_check
          %p255 = pneg %p150
        $region30: #{tpu_custom_call.1} parent=11 // pred_check_branch
          %257 = sbr.rel (%p255) target = $region32
        $region31: #{tpu_custom_call.1} parent=11 // pred_region
          _
        $region32: #{tpu_custom_call.1} parent=11 // pred_fallthru
          _
        // Predicated region
        $region33: #{tpu_custom_call.1} parent=11 // pred_check
          %p258 = pneg %p171
        $region34: #{tpu_custom_call.1} parent=11 // pred_check_branch
          %260 = sbr.rel (%p258) target = $region36
        $region35: #{tpu_custom_call.1} parent=11 // pred_region
          %s262 = ssub.s32 1024, 1024
          %263 = vsyncadd [#allocation8], %s262
          %s264 = sshll.u32 [#allocation7], 4
          %s265 = int_to_ptr.vmem [resolvable:$true] %s264
          %270 = dma.hbm_to_vmem [thread:$0]  %s6, 1024, %s265, [#allocation8], 64, 64, 4
        $region36: #{tpu_custom_call.1} parent=11 // pred_fallthru
          _
        // Predicated region
        $region37: #{tpu_custom_call.1} parent=11 // pred_check
          %p271 = pneg %p192
        $region38: #{tpu_custom_call.1} parent=11 // pred_check_branch
          %273 = sbr.rel (%p271) target = $region40
        $region39: #{tpu_custom_call.1} parent=11 // pred_region
          _
        $region40: #{tpu_custom_call.1} parent=11 // pred_fallthru
          _
      $region12: #{tpu_custom_call.1} parent=5 // pred_fallthru
        _
      %p274 = scmp.lt.s32.totalorder %s19, 2
      // Predicated region
      $region41: #{tpu_custom_call.1} parent=5 // pred_check
        %p275 = pneg %p274
      $region42: #{tpu_custom_call.1} parent=5 // pred_check_branch
        %277 = sbr.rel (%p275) target = $region44
      $region43: #{tpu_custom_call.1} parent=5 // pred_region
        // Predicated region
        $region45: #{tpu_custom_call.1} parent=43 // pred_check
          %p278 = pneg %p39
        $region46: #{tpu_custom_call.1} parent=43 // pred_check_branch
          %280 = sbr.rel (%p278) target = $region48
        $region47: #{tpu_custom_call.1} parent=43 // pred_region
          %p281 = scmp.lt.s32.totalorder %s19, 1
          %s282 = scalar_select %p281, %s19, 1
          %s283 = smul.addr %s282, 8
          %s284 = smul.addr %s283, 8
          %s285 = scalar_lea.vmem %s0, %s284
        $region48: #{tpu_custom_call.1} parent=43 // pred_fallthru
          _
      $region44: #{tpu_custom_call.1} parent=5 // pred_fallthru
        _
      %p286 = scmp.le.s32.totalorder 1, %s19
      %p287 = scmp.lt.s32.totalorder %s19, 3
      %p288 = pnand %p286, %p287
      %p289 = pneg %p288
      // Predicated region
      $region49: #{tpu_custom_call.1} parent=5 // pred_check
        _
      $region50: #{tpu_custom_call.1} parent=5 // pred_check_branch
        %291 = sbr.rel (%p288) target = $region52
      $region51: #{tpu_custom_call.1} parent=5 // pred_region
        %s292 = ssub.s32 %s19, 1
        // Predicated region
        $region53: #{tpu_custom_call.1} parent=51 // pred_check
          %p293 = pneg %p129
        $region54: #{tpu_custom_call.1} parent=51 // pred_check_branch
          %295 = sbr.rel (%p293) target = $region56
        $region55: #{tpu_custom_call.1} parent=51 // pred_region
          %296 = dma.done [#allocation5], 3072
        $region56: #{tpu_custom_call.1} parent=51 // pred_fallthru
          _
        // Predicated region
        $region57: #{tpu_custom_call.1} parent=51 // pred_check
          %p297 = pneg %p171
        $region58: #{tpu_custom_call.1} parent=51 // pred_check_branch
          %299 = sbr.rel (%p297) target = $region60
        $region59: #{tpu_custom_call.1} parent=51 // pred_region
          %300 = dma.done [#allocation8], 1024
        $region60: #{tpu_custom_call.1} parent=51 // pred_fallthru
          _
        %p301 = scmp.lt.s32.totalorder %s24, 1
        %s302 = scalar_select %p301, %s24, 1
        %s303 = smul.addr %s302, 8
        %s304 = smul.addr %s303, 8
        %s305 = scalar_lea.vmem %s0, %s304
        %p306 = pneg %p45
        %p307 = pneg %p42
        %p308 = pneg %p66
        %p309 = pneg %p63
        %p310 = pneg %p87
        %p311 = pneg %p84
        %p312 = pneg %p108
        %p313 = pneg %p105
        %p314 = pneg %p129
        %p315 = pneg %p126
        %p316 = pneg %p150
        %p317 = pneg %p147
        %p318 = pneg %p171
        %p319 = pneg %p168
        %p320 = pneg %p192
        %p321 = pneg %p189
        %p322 = pneg %p218
        %p323 = pneg %p215
        %s324 = sand.u32 %s205, 1
        %s325 = scalar_lea.sflag [#allocation6], %s324
        %s326 = sand.u32 %s205, 1
        %s327 = smul.addr %s326, 64
        %s328 = scalar_lea.vmem [#allocation9], %s327
        %p329 = scmp.lt.s32.totalorder %s24, 1
        %s330 = scalar_select %p329, %s24, 1
        %s331 = smul.addr %s330, 8
        %s332 = smul.addr %s331, 8
        %s333 = scalar_lea.vmem %s0, %s332
        %v335 = vld [vmem:[%s333] sm:$0xff]
        %v336 = vld [vmem:[%s333 + $0x8] sm:$0xff]
        %v337 = vld [vmem:[%s333 + $0x10] sm:$0xff]
        %v338 = vld [vmem:[%s333 + $0x18] sm:$0xff]
        %v339 = vld [vmem:[%s333 + $0x20] sm:$0xff]
        %v340 = vld [vmem:[%s333 + $0x28] sm:$0xff]
        %v341 = vld [vmem:[%s333 + $0x30] sm:$0xff]
        %v342 = vld [vmem:[%s333 + $0x38] sm:$0xff]
        %v343 = vld [vmem:[%s3] sm:$0xff]
        %v344 = vld [vmem:[%s3 + $0x8] sm:$0xff]
        %v345 = vld [vmem:[%s3 + $0x10] sm:$0xff]
        %v346 = vld [vmem:[%s3 + $0x18] sm:$0xff]
        %v347 = vld [vmem:[%s3 + $0x20] sm:$0xff]
        %v348 = vld [vmem:[%s3 + $0x28] sm:$0xff]
        %v349 = vld [vmem:[%s3 + $0x30] sm:$0xff]
        %v350 = vld [vmem:[%s3 + $0x38] sm:$0xff]
        %v351 = vld [vmem:[%s3 + $0x40] sm:$0xff]
        %v352 = vld [vmem:[%s3 + $0x48] sm:$0xff]
        %v353 = vld [vmem:[%s3 + $0x50] sm:$0xff]
        %v354 = vld [vmem:[%s3 + $0x58] sm:$0xff]
        %v355 = vld [vmem:[%s3 + $0x60] sm:$0xff]
        %v356 = vld [vmem:[%s3 + $0x68] sm:$0xff]
        %v357 = vld [vmem:[%s3 + $0x70] sm:$0xff]
        %v358 = vld [vmem:[%s3 + $0x78] sm:$0xff]
        %v359 = vadd.f32 %v335, %v336
        %v360 = vadd.f32 %v359, %v337
        %v361 = vadd.f32 %v360, %v338
        %v362 = vadd.f32 %v361, %v339
        %v363 = vadd.f32 %v362, %v340
        %v364 = vadd.f32 %v363, %v341
        %v365 = vadd.f32 %v364, %v342
        %v366 = vrot.slane %v365, 4
        %v367 = vadd.f32 %v365, %v366
        %v368 = vrot.slane %v367, 2
        %v369 = vadd.f32 %v367, %v368
        %v370 = vrot.slane %v369, 1
        %v371 = vadd.f32 %v369, %v370
        %v372 = vmul.f32 %v335, %v335
        %v373 = vmul.f32 %v336, %v336
        %v374 = vmul.f32 %v337, %v337
        %v375 = vmul.f32 %v338, %v338
        %v376 = vmul.f32 %v339, %v339
        %v377 = vmul.f32 %v340, %v340
        %v378 = vmul.f32 %v341, %v341
        %v379 = vmul.f32 %v342, %v342
        %v380 = vadd.f32 %v372, %v373
        %v381 = vadd.f32 %v380, %v374
        %v382 = vadd.f32 %v381, %v375
        %v383 = vadd.f32 %v382, %v376
        %v384 = vadd.f32 %v383, %v377
        %v385 = vadd.f32 %v384, %v378
        %v386 = vadd.f32 %v385, %v379
        %v387 = vrot.slane %v386, 4
        %v388 = vadd.f32 %v386, %v387
        %v389 = vrot.slane %v388, 2
        %v390 = vadd.f32 %v388, %v389
        %v391 = vrot.slane %v390, 1
        %v392 = vadd.f32 %v390, %v391
        %393 = vmatprep.subr.mxu0 0.0
        %394 = vmatpush1.msra.mxu0 %v343
        %395 = vmatprep.subr.mxu0 0.0
        %396 = vmatpush1.msra.mxu0 %v344
        %397 = vmatprep.subr.mxu0 0.0
        %398 = vmatpush1.msra.mxu0 %v345
        %399 = vmatprep.subr.mxu0 0.0
        %400 = vmatpush1.msra.mxu0 %v346
        %401 = vmatprep.subr.mxu0 0.0
        %402 = vmatpush1.msra.mxu0 %v347
        %403 = vmatprep.subr.mxu0 0.0
        %404 = vmatpush1.msra.mxu0 %v348
        %405 = vmatprep.subr.mxu0 0.0
        %406 = vmatpush1.msra.mxu0 %v349
        %407 = vmatprep.subr.mxu0 0.0
        %408 = vmatpush1.msra.mxu0 %v350
        %409 = vmatprep.subr.mxu0 0.0
        %410 = vmatpush1.msra.mxu0 %v351
        %411 = vmatprep.subr.mxu0 0.0
        %412 = vmatpush1.msra.mxu0 %v352
        %413 = vmatprep.subr.mxu0 0.0
        %414 = vmatpush1.msra.mxu0 %v353
        %415 = vmatprep.subr.mxu0 0.0
        %416 = vmatpush1.msra.mxu0 %v354
        %417 = vmatprep.subr.mxu0 0.0
        %418 = vmatpush1.msra.mxu0 %v355
        %419 = vmatprep.subr.mxu0 0.0
        %420 = vmatpush1.msra.mxu0 %v356
        %421 = vmatprep.subr.mxu0 0.0
        %422 = vmatpush1.msra.mxu0 %v357
        %423 = vmatprep.subr.mxu0 0.0
        %424 = vmatpush1.msra.mxu0 %v358
        %425 = vmatprep.subr.mxu0 0.0
        %426 = vmatpush1.msra.mxu0 0.0
        %427 = vmatprep.subr.mxu0 0.0
        %428 = vmatpush1.msra.mxu0 0.0
        %429 = vmatprep.subr.mxu0 0.0
        %430 = vmatpush1.msra.mxu0 0.0
        %431 = vmatprep.subr.mxu0 0.0
        %432 = vmatpush1.msra.mxu0 0.0
        %433 = vmatprep.subr.mxu0 0.0
        %434 = vmatpush1.msra.mxu0 0.0
        %435 = vmatprep.subr.mxu0 0.0
        %436 = vmatpush1.msra.mxu0 0.0
        %437 = vmatprep.subr.mxu0 0.0
        %438 = vmatpush1.msra.mxu0 0.0
        %439 = vmatprep.subr.mxu0 0.0
        %440 = vmatpush1.msra.mxu0 0.0
        %441 = vmatprep.subr.mxu0 0.0
        %442 = vmatpush1.msra.mxu0 0.0
        %443 = vmatprep.subr.mxu0 0.0
        %444 = vmatpush1.msra.mxu0 0.0
        %445 = vmatprep.subr.mxu0 0.0
        %446 = vmatpush1.msra.mxu0 0.0
        %447 = vmatprep.subr.mxu0 0.0
        %448 = vmatpush1.msra.mxu0 0.0
        %449 = vmatprep.subr.mxu0 0.0
        %450 = vmatpush1.msra.mxu0 0.0
        %451 = vmatprep.subr.mxu0 0.0
        %452 = vmatpush1.msra.mxu0 0.0
        %453 = vmatprep.subr.mxu0 0.0
        %454 = vmatpush1.msra.mxu0 0.0
        %455 = vmatprep.subr.mxu0 0.0
        %456 = vmatpush1.msra.mxu0 0.0
        %457 = vmatprep.mubr.f32.mxu0 0.0
        %458 = vmatmul.mubr.f32.gmra.mrb[0].mxu0 %v371
        %v459 = vpop.f32.mrb[0].mxu0
        %v460 = vadd.f32 0.0, %v459
        %v461 = vpop.f32.mrb[0].mxu0
        %462 = vdwg.mxu0
        %v463 = vmul.f32 %v460, 0.00390625
        %464 = vmatprep.subr.mxu0 0.0
        %465 = vmatpush1.msra.mxu0 %v343
        %466 = vmatprep.subr.mxu0 0.0
        %467 = vmatpush1.msra.mxu0 %v344
        %468 = vmatprep.subr.mxu0 0.0
        %469 = vmatpush1.msra.mxu0 %v345
        %470 = vmatprep.subr.mxu0 0.0
        %471 = vmatpush1.msra.mxu0 %v346
        %472 = vmatprep.subr.mxu0 0.0
        %473 = vmatpush1.msra.mxu0 %v347
        %474 = vmatprep.subr.mxu0 0.0
        %475 = vmatpush1.msra.mxu0 %v348
        %476 = vmatprep.subr.mxu0 0.0
        %477 = vmatpush1.msra.mxu0 %v349
        %478 = vmatprep.subr.mxu0 0.0
        %479 = vmatpush1.msra.mxu0 %v350
        %480 = vmatprep.subr.mxu0 0.0
        %481 = vmatpush1.msra.mxu0 %v351
        %482 = vmatprep.subr.mxu0 0.0
        %483 = vmatpush1.msra.mxu0 %v352
        %484 = vmatprep.subr.mxu0 0.0
        %485 = vmatpush1.msra.mxu0 %v353
        %486 = vmatprep.subr.mxu0 0.0
        %487 = vmatpush1.msra.mxu0 %v354
        %488 = vmatprep.subr.mxu0 0.0
        %489 = vmatpush1.msra.mxu0 %v355
        %490 = vmatprep.subr.mxu0 0.0
        %491 = vmatpush1.msra.mxu0 %v356
        %492 = vmatprep.subr.mxu0 0.0
        %493 = vmatpush1.msra.mxu0 %v357
        %494 = vmatprep.subr.mxu0 0.0
        %495 = vmatpush1.msra.mxu0 %v358
        %496 = vmatprep.subr.mxu0 0.0
        %497 = vmatpush1.msra.mxu0 0.0
        %498 = vmatprep.subr.mxu0 0.0
        %499 = vmatpush1.msra.mxu0 0.0
        %500 = vmatprep.subr.mxu0 0.0
        %501 = vmatpush1.msra.mxu0 0.0
        %502 = vmatprep.subr.mxu0 0.0
        %503 = vmatpush1.msra.mxu0 0.0
        %504 = vmatprep.subr.mxu0 0.0
        %505 = vmatpush1.msra.mxu0 0.0
        %506 = vmatprep.subr.mxu0 0.0
        %507 = vmatpush1.msra.mxu0 0.0
        %508 = vmatprep.subr.mxu0 0.0
        %509 = vmatpush1.msra.mxu0 0.0
        %510 = vmatprep.subr.mxu0 0.0
        %511 = vmatpush1.msra.mxu0 0.0
        %512 = vmatprep.subr.mxu0 0.0
        %513 = vmatpush1.msra.mxu0 0.0
        %514 = vmatprep.subr.mxu0 0.0
        %515 = vmatpush1.msra.mxu0 0.0
        %516 = vmatprep.subr.mxu0 0.0
        %517 = vmatpush1.msra.mxu0 0.0
        %518 = vmatprep.subr.mxu0 0.0
        %519 = vmatpush1.msra.mxu0 0.0
        %520 = vmatprep.subr.mxu0 0.0
        %521 = vmatpush1.msra.mxu0 0.0
        %522 = vmatprep.subr.mxu0 0.0
        %523 = vmatpush1.msra.mxu0 0.0
        %524 = vmatprep.subr.mxu0 0.0
        %525 = vmatpush1.msra.mxu0 0.0
        %526 = vmatprep.subr.mxu0 0.0
        %527 = vmatpush1.msra.mxu0 0.0
        %528 = vmatprep.mubr.f32.mxu0 0.0
        %529 = vmatmul.mubr.f32.gmra.mrb[0].mxu0 %v392
        %v530 = vpop.f32.mrb[0].mxu0
        %v531 = vadd.f32 0.0, %v530
        %v532 = vpop.f32.mrb[0].mxu0
        %533 = vdwg.mxu0
        %v534 = vmul.f32 %v531, 0.00390625
        %v535 = vmul.f32 %v463, %v463
        %v536 = vsub.f32 %v534, %v535
        %v537 = vadd.f32 %v536, 1e-05
        %v538 = vrsqrt.pop %v537
        %vm539 = vcmask 261120
        %v541 = vsel %vm539, %v463, 0
        %v544 = vsel %vm539, %v343, 0
        %v547 = vsel %vm539, %v344, 0
        %v550 = vsel %vm539, %v345, 0
        %v553 = vsel %vm539, %v346, 0
        %v556 = vsel %vm539, %v347, 0
        %v559 = vsel %vm539, %v348, 0
        %v562 = vsel %vm539, %v349, 0
        %v565 = vsel %vm539, %v350, 0
        %v568 = vsel %vm539, %v351, 0
        %v571 = vsel %vm539, %v352, 0
        %v574 = vsel %vm539, %v353, 0
        %v577 = vsel %vm539, %v354, 0
        %v580 = vsel %vm539, %v355, 0
        %v583 = vsel %vm539, %v356, 0
        %v586 = vsel %vm539, %v357, 0
        %v589 = vsel %vm539, %v358, 0
        %591 = vmatprep.subr.mxu0 0.0
        %592 = vmatpush1.xpose.msra.mxu0 %v544
        %593 = vmatprep.subr.mxu0 0.0
        %594 = vmatpush1.xpose.msra.mxu0 %v547
        %595 = vmatprep.subr.mxu0 0.0
        %596 = vmatpush1.xpose.msra.mxu0 %v550
        %597 = vmatprep.subr.mxu0 0.0
        %598 = vmatpush1.xpose.msra.mxu0 %v553
        %599 = vmatprep.subr.mxu0 0.0
        %600 = vmatpush1.xpose.msra.mxu0 %v556
        %601 = vmatprep.subr.mxu0 0.0
        %602 = vmatpush1.xpose.msra.mxu0 %v559
        %603 = vmatprep.subr.mxu0 0.0
        %604 = vmatpush1.xpose.msra.mxu0 %v562
        %605 = vmatprep.subr.mxu0 0.0
        %606 = vmatpush1.xpose.msra.mxu0 %v565
        %607 = vmatprep.subr.mxu0 0.0
        %608 = vmatpush1.xpose.msra.mxu0 %v568
        %609 = vmatprep.subr.mxu0 0.0
        %610 = vmatpush1.xpose.msra.mxu0 %v571
        %611 = vmatprep.subr.mxu0 0.0
        %612 = vmatpush1.xpose.msra.mxu0 %v574
        %613 = vmatprep.subr.mxu0 0.0
        %614 = vmatpush1.xpose.msra.mxu0 %v577
        %615 = vmatprep.subr.mxu0 0.0
        %616 = vmatpush1.xpose.msra.mxu0 %v580
        %617 = vmatprep.subr.mxu0 0.0
        %618 = vmatpush1.xpose.msra.mxu0 %v583
        %619 = vmatprep.subr.mxu0 0.0
        %620 = vmatpush1.xpose.msra.mxu0 %v586
        %621 = vmatprep.subr.mxu0 0.0
        %622 = vmatpush1.xpose.msra.mxu0 %v589
        %623 = vmatprep.subr.mxu0 0.0
        %624 = vmatpush1.xpose.msra.mxu0 0.0
        %625 = vmatprep.subr.mxu0 0.0
        %626 = vmatpush1.xpose.msra.mxu0 0.0
        %627 = vmatprep.subr.mxu0 0.0
        %628 = vmatpush1.xpose.msra.mxu0 0.0
        %629 = vmatprep.subr.mxu0 0.0
        %630 = vmatpush1.xpose.msra.mxu0 0.0
        %631 = vmatprep.subr.mxu0 0.0
        %632 = vmatpush1.xpose.msra.mxu0 0.0
        %633 = vmatprep.subr.mxu0 0.0
        %634 = vmatpush1.xpose.msra.mxu0 0.0
        %635 = vmatprep.subr.mxu0 0.0
        %636 = vmatpush1.xpose.msra.mxu0 0.0
        %637 = vmatprep.subr.mxu0 0.0
        %638 = vmatpush1.xpose.msra.mxu0 0.0
        %639 = vmatprep.subr.mxu0 0.0
        %640 = vmatpush1.xpose.msra.mxu0 0.0
        %641 = vmatprep.subr.mxu0 0.0
        %642 = vmatpush1.xpose.msra.mxu0 0.0
        %643 = vmatprep.subr.mxu0 0.0
        %644 = vmatpush1.xpose.msra.mxu0 0.0
        %645 = vmatprep.subr.mxu0 0.0
        %646 = vmatpush1.xpose.msra.mxu0 0.0
        %647 = vmatprep.subr.mxu0 0.0
        %648 = vmatpush1.xpose.msra.mxu0 0.0
        %649 = vmatprep.subr.mxu0 0.0
        %650 = vmatpush1.xpose.msra.mxu0 0.0
        %651 = vmatprep.subr.mxu0 0.0
        %652 = vmatpush1.xpose.msra.mxu0 0.0
        %653 = vmatprep.subr.mxu0 0.0
        %654 = vmatpush1.xpose.msra.mxu0 0.0
        %655 = vmatprep.mubr.f32.mxu0 0.0
        %656 = vmatmul.mubr.f32.gmra.mrb[0].mxu0 %v541
        %v657 = vpop.f32.mrb[0].mxu0
        %v658 = vadd.f32 0.0, %v657
        %v659 = vpop.f32.mrb[0].mxu0
        %660 = vdwg.mxu0
        %v662 = vsel %vm539, %v538, 0
        %664 = vmatprep.subr.mxu0 0.0
        %665 = vmatpush1.xpose.msra.mxu0 %v544
        %666 = vmatprep.subr.mxu0 0.0
        %667 = vmatpush1.xpose.msra.mxu0 %v547
        %668 = vmatprep.subr.mxu0 0.0
        %669 = vmatpush1.xpose.msra.mxu0 %v550
        %670 = vmatprep.subr.mxu0 0.0
        %671 = vmatpush1.xpose.msra.mxu0 %v553
        %672 = vmatprep.subr.mxu0 0.0
        %673 = vmatpush1.xpose.msra.mxu0 %v556
        %674 = vmatprep.subr.mxu0 0.0
        %675 = vmatpush1.xpose.msra.mxu0 %v559
        %676 = vmatprep.subr.mxu0 0.0
        %677 = vmatpush1.xpose.msra.mxu0 %v562
        %678 = vmatprep.subr.mxu0 0.0
        %679 = vmatpush1.xpose.msra.mxu0 %v565
        %680 = vmatprep.subr.mxu0 0.0
        %681 = vmatpush1.xpose.msra.mxu0 %v568
        %682 = vmatprep.subr.mxu0 0.0
        %683 = vmatpush1.xpose.msra.mxu0 %v571
        %684 = vmatprep.subr.mxu0 0.0
        %685 = vmatpush1.xpose.msra.mxu0 %v574
        %686 = vmatprep.subr.mxu0 0.0
        %687 = vmatpush1.xpose.msra.mxu0 %v577
        %688 = vmatprep.subr.mxu0 0.0
        %689 = vmatpush1.xpose.msra.mxu0 %v580
        %690 = vmatprep.subr.mxu0 0.0
        %691 = vmatpush1.xpose.msra.mxu0 %v583
        %692 = vmatprep.subr.mxu0 0.0
        %693 = vmatpush1.xpose.msra.mxu0 %v586
        %694 = vmatprep.subr.mxu0 0.0
        %695 = vmatpush1.xpose.msra.mxu0 %v589
        %696 = vmatprep.subr.mxu0 0.0
        %697 = vmatpush1.xpose.msra.mxu0 0.0
        %698 = vmatprep.subr.mxu0 0.0
        %699 = vmatpush1.xpose.msra.mxu0 0.0
        %700 = vmatprep.subr.mxu0 0.0
        %701 = vmatpush1.xpose.msra.mxu0 0.0
        %702 = vmatprep.subr.mxu0 0.0
        %703 = vmatpush1.xpose.msra.mxu0 0.0
        %704 = vmatprep.subr.mxu0 0.0
        %705 = vmatpush1.xpose.msra.mxu0 0.0
        %706 = vmatprep.subr.mxu0 0.0
        %707 = vmatpush1.xpose.msra.mxu0 0.0
        %708 = vmatprep.subr.mxu0 0.0
        %709 = vmatpush1.xpose.msra.mxu0 0.0
        %710 = vmatprep.subr.mxu0 0.0
        %711 = vmatpush1.xpose.msra.mxu0 0.0
        %712 = vmatprep.subr.mxu0 0.0
        %713 = vmatpush1.xpose.msra.mxu0 0.0
        %714 = vmatprep.subr.mxu0 0.0
        %715 = vmatpush1.xpose.msra.mxu0 0.0
        %716 = vmatprep.subr.mxu0 0.0
        %717 = vmatpush1.xpose.msra.mxu0 0.0
        %718 = vmatprep.subr.mxu0 0.0
        %719 = vmatpush1.xpose.msra.mxu0 0.0
        %720 = vmatprep.subr.mxu0 0.0
        %721 = vmatpush1.xpose.msra.mxu0 0.0
        %722 = vmatprep.subr.mxu0 0.0
        %723 = vmatpush1.xpose.msra.mxu0 0.0
        %724 = vmatprep.subr.mxu0 0.0
        %725 = vmatpush1.xpose.msra.mxu0 0.0
        %726 = vmatprep.subr.mxu0 0.0
        %727 = vmatpush1.xpose.msra.mxu0 0.0
        %728 = vmatprep.mubr.f32.mxu0 0.0
        %729 = vmatmul.mubr.f32.gmra.mrb[0].mxu0 %v662
        %v730 = vpop.f32.mrb[0].mxu0
        %v731 = vadd.f32 0.0, %v730
        %v732 = vpop.f32.mrb[0].mxu0
        %733 = vdwg.mxu0
        %v734 = vld [vmem:[%s1] sm:$0x1]
        %v735 = vmul.f32 %v731, %v734
        %v736 = vld [vmem:[%s2] sm:$0x1]
        %v737 = vmul.f32 %v658, %v735
        %v738 = vsub.f32 %v736, %v737
        %v739 = vlaneseq
        %v740 = vshrl.u32 %v739, 7
        %v741 = vsub.s32 0, %v740
        %v742 = vrot.slane %v735, %v741
        %v743 = vmul.f32 %v335, %v742
        %v744 = vmul.f32 %v336, %v742
        %v745 = vmul.f32 %v337, %v742
        %v746 = vmul.f32 %v338, %v742
        %v747 = vmul.f32 %v339, %v742
        %v748 = vmul.f32 %v340, %v742
        %v749 = vmul.f32 %v341, %v742
        %v750 = vmul.f32 %v342, %v742
        %v752 = vlaneseq
        %v753 = vshrl.u32 %v752, 7
        %v754 = vsub.s32 0, %v753
        %v755 = vrot.slane %v738, %v754
        %v757 = vadd.f32 %v743, %v755
        %v758 = vadd.f32 %v744, %v755
        %v759 = vadd.f32 %v745, %v755
        %v760 = vadd.f32 %v746, %v755
        %v761 = vadd.f32 %v747, %v755
        %v762 = vadd.f32 %v748, %v755
        %v763 = vadd.f32 %v749, %v755
        %v764 = vadd.f32 %v750, %v755
        %v765 = vpack.c.bf16 %v758, %v757
        %v766 = vpack.c.bf16 %v760, %v759
        %v767 = vpack.c.bf16 %v762, %v761
        %v768 = vpack.c.bf16 %v764, %v763
        %v769 = vld [vmem:[#allocation4] sm:$0xff]
        %v770 = vld [vmem:[#allocation4 + $0x8] sm:$0xf]
        %v771 = vld [vmem:[#allocation4 + $0xc] sm:$0xff]
        %v772 = vld [vmem:[#allocation4 + $0x14] sm:$0xf]
        %v773 = vld [vmem:[#allocation4 + $0x18] sm:$0xff]
        %v774 = vld [vmem:[#allocation4 + $0x20] sm:$0xf]
        %v775 = vld [vmem:[#allocation4 + $0x24] sm:$0xff]
        %v776 = vld [vmem:[#allocation4 + $0x2c] sm:$0xf]
        %v777 = vld [vmem:[#allocation4 + $0x30] sm:$0xff]
        %v778 = vld [vmem:[#allocation4 + $0x38] sm:$0xf]
        %v779 = vld [vmem:[#allocation4 + $0x3c] sm:$0xff]
        %v780 = vld [vmem:[#allocation4 + $0x44] sm:$0xf]
        %v781 = vld [vmem:[#allocation4 + $0x48] sm:$0xff]
        %v782 = vld [vmem:[#allocation4 + $0x50] sm:$0xf]
        %v783 = vld [vmem:[#allocation4 + $0x54] sm:$0xff]
        %v784 = vld [vmem:[#allocation4 + $0x5c] sm:$0xf]
        %v785 = vld [vmem:[#allocation4 + $0x60] sm:$0xff]
        %v786 = vld [vmem:[#allocation4 + $0x68] sm:$0xf]
        %v787 = vld [vmem:[#allocation4 + $0x6c] sm:$0xff]
        %v788 = vld [vmem:[#allocation4 + $0x74] sm:$0xf]
        %v789 = vld [vmem:[#allocation4 + $0x78] sm:$0xff]
        %v790 = vld [vmem:[#allocation4 + $0x80] sm:$0xf]
        %v791 = vld [vmem:[#allocation4 + $0x84] sm:$0xff]
        %v792 = vld [vmem:[#allocation4 + $0x8c] sm:$0xf]
        %v793 = vld [vmem:[#allocation4 + $0x90] sm:$0xff]
        %v794 = vld [vmem:[#allocation4 + $0x98] sm:$0xf]
        %v795 = vld [vmem:[#allocation4 + $0x9c] sm:$0xff]
        %v796 = vld [vmem:[#allocation4 + $0xa4] sm:$0xf]
        %v797 = vld [vmem:[#allocation4 + $0xa8] sm:$0xff]
        %v798 = vld [vmem:[#allocation4 + $0xb0] sm:$0xf]
        %v799 = vld [vmem:[#allocation4 + $0xb4] sm:$0xff]
        %v800 = vld [vmem:[#allocation4 + $0xbc] sm:$0xf]
        %v801 = vld [vmem:[%s5] sm:$0x7]
        %v803 = vlaneseq
        %v804 = vshrl.u32 %v803, 7
        %v805 = vsub.s32 0, %v804
        %v806 = vrot.slane %v801, %v805
        %v807 = vlaneseq
        %v808 = vshrl.u32 %v807, 7
        %v809 = vsub.s32 1, %v808
        %v810 = vrot.slane %v801, %v809
        %v811 = vlaneseq
        %v812 = vshrl.u32 %v811, 7
        %v813 = vsub.s32 2, %v812
        %v814 = vrot.slane %v801, %v813
        %v850 = vunpack.c.l.b16 %v769
        %v851 = vunpack.c.h.b16 %v769
        %v852 = vunpack.c.l.b16 %v770
        %v853 = vunpack.c.l.b16 %v771
        %v854 = vunpack.c.h.b16 %v771
        %v855 = vunpack.c.l.b16 %v772
        %v856 = vunpack.c.l.b16 %v773
        %v857 = vunpack.c.h.b16 %v773
        %v858 = vunpack.c.l.b16 %v774
        %v859 = vunpack.c.l.b16 %v775
        %v860 = vunpack.c.h.b16 %v775
        %v861 = vunpack.c.l.b16 %v776
        %v862 = vunpack.c.l.b16 %v777
        %v863 = vunpack.c.h.b16 %v777
        %v864 = vunpack.c.l.b16 %v778
        %v865 = vunpack.c.l.b16 %v779
        %v866 = vunpack.c.h.b16 %v779
        %v867 = vunpack.c.l.b16 %v780
        %v868 = vunpack.c.l.b16 %v781
        %v869 = vunpack.c.h.b16 %v781
        %v870 = vunpack.c.l.b16 %v782
        %v871 = vunpack.c.l.b16 %v783
        %v872 = vunpack.c.h.b16 %v783
        %v873 = vunpack.c.l.b16 %v784
        %v874 = vunpack.c.l.b16 %v785
        %v875 = vunpack.c.h.b16 %v785
        %v876 = vunpack.c.l.b16 %v786
        %v877 = vunpack.c.l.b16 %v787
        %v878 = vunpack.c.h.b16 %v787
        %v879 = vunpack.c.l.b16 %v788
        %v880 = vunpack.c.l.b16 %v789
        %v881 = vunpack.c.h.b16 %v789
        %v882 = vunpack.c.l.b16 %v790
        %v883 = vunpack.c.l.b16 %v791
        %v884 = vunpack.c.h.b16 %v791
        %v885 = vunpack.c.l.b16 %v792
        %v886 = vunpack.c.l.b16 %v793
        %v887 = vunpack.c.h.b16 %v793
        %v888 = vunpack.c.l.b16 %v794
        %v889 = vunpack.c.l.b16 %v795
        %v890 = vunpack.c.h.b16 %v795
        %v891 = vunpack.c.l.b16 %v796
        %v892 = vunpack.c.l.b16 %v797
        %v893 = vunpack.c.h.b16 %v797
        %v894 = vunpack.c.l.b16 %v798
        %v895 = vunpack.c.l.b16 %v799
        %v896 = vunpack.c.h.b16 %v799
        %v897 = vunpack.c.l.b16 %v800
        %v898 = vpack.c.b16 %v853, %v850
        %v899 = vpack.c.b16 %v854, %v851
        %v900 = vpack.c.b16 %v855, %v852
        %v901 = vpack.c.b16 %v859, %v856
        %v902 = vpack.c.b16 %v860, %v857
        %v903 = vpack.c.b16 %v861, %v858
        %v904 = vpack.c.b16 %v865, %v862
        %v905 = vpack.c.b16 %v866, %v863
        %v906 = vpack.c.b16 %v867, %v864
        %v907 = vpack.c.b16 %v871, %v868
        %v908 = vpack.c.b16 %v872, %v869
        %v909 = vpack.c.b16 %v873, %v870
        %v910 = vpack.c.b16 %v877, %v874
        %v911 = vpack.c.b16 %v878, %v875
        %v912 = vpack.c.b16 %v879, %v876
        %v913 = vpack.c.b16 %v883, %v880
        %v914 = vpack.c.b16 %v884, %v881
        %v915 = vpack.c.b16 %v885, %v882
        %v916 = vpack.c.b16 %v889, %v886
        %v917 = vpack.c.b16 %v890, %v887
        %v918 = vpack.c.b16 %v891, %v888
        %v919 = vpack.c.b16 %v895, %v892
        %v920 = vpack.c.b16 %v896, %v893
        %v921 = vpack.c.b16 %v897, %v894
        %946 = vmatprep.subr.bf16.mxu0 %v899
        %947 = vmatpush1.bf16.msra.mxu0 %v898
        %948 = vmatprep.subr.bf16.mxu0 %v902
        %949 = vmatpush1.bf16.msra.mxu0 %v901
        %950 = vmatprep.subr.bf16.mxu0 %v905
        %951 = vmatpush1.bf16.msra.mxu0 %v904
        %952 = vmatprep.subr.bf16.mxu0 %v908
        %953 = vmatpush1.bf16.msra.mxu0 %v907
        %954 = vmatprep.subr.bf16.mxu0 %v911
        %955 = vmatpush1.bf16.msra.mxu0 %v910
        %956 = vmatprep.subr.bf16.mxu0 %v914
        %957 = vmatpush1.bf16.msra.mxu0 %v913
        %958 = vmatprep.subr.bf16.mxu0 %v917
        %959 = vmatpush1.bf16.msra.mxu0 %v916
        %960 = vmatprep.subr.bf16.mxu0 %v920
        %961 = vmatpush1.bf16.msra.mxu0 %v919
        %962 = vmatprep.subr.bf16.mxu0 0
        %963 = vmatpush1.bf16.msra.mxu0 0
        %964 = vmatprep.subr.bf16.mxu0 0
        %965 = vmatpush1.bf16.msra.mxu0 0
        %966 = vmatprep.subr.bf16.mxu0 0
        %967 = vmatpush1.bf16.msra.mxu0 0
        %968 = vmatprep.subr.bf16.mxu0 0
        %969 = vmatpush1.bf16.msra.mxu0 0
        %970 = vmatprep.subr.bf16.mxu0 0
        %971 = vmatpush1.bf16.msra.mxu0 0
        %972 = vmatprep.subr.bf16.mxu0 0
        %973 = vmatpush1.bf16.msra.mxu0 0
        %974 = vmatprep.subr.bf16.mxu0 0
        %975 = vmatpush1.bf16.msra.mxu0 0
        %976 = vmatprep.subr.bf16.mxu0 0
        %977 = vmatpush1.bf16.msra.mxu0 0
        %978 = vmatprep.mubr.bf16.mxu0 0
        %979 = vmatmul.mubr.bf16.gmra.mrb[0].mxu0 %v765
        %v980 = vpop.f32.mrb[0].mxu0
        %v981 = vadd.f32 %v806, %v980
        %v982 = vpop.f32.mrb[0].mxu0
        %v983 = vadd.f32 %v810, %v982
        %v984 = vpop.f32.mrb[0].mxu0
        %v985 = vadd.f32 %v806, %v984
        %v986 = vpop.f32.mrb[0].mxu0
        %v987 = vadd.f32 %v810, %v986
        %988 = vmatprep.mubr.bf16.mxu0 0
        %989 = vmatmul.mubr.bf16.gmra.mrb[0].mxu0 %v766
        %v990 = vpop.f32.mrb[0].mxu0
        %v991 = vadd.f32 %v806, %v990
        %v992 = vpop.f32.mrb[0].mxu0
        %v993 = vadd.f32 %v810, %v992
        %v994 = vpop.f32.mrb[0].mxu0
        %v995 = vadd.f32 %v806, %v994
        %v996 = vpop.f32.mrb[0].mxu0
        %v997 = vadd.f32 %v810, %v996
        %998 = vmatprep.mubr.bf16.mxu0 0
        %999 = vmatmul.mubr.bf16.gmra.mrb[0].mxu0 %v767
        %v1000 = vpop.f32.mrb[0].mxu0
        %v1001 = vadd.f32 %v806, %v1000
        %v1002 = vpop.f32.mrb[0].mxu0
        %v1003 = vadd.f32 %v810, %v1002
        %v1004 = vpop.f32.mrb[0].mxu0
        %v1005 = vadd.f32 %v806, %v1004
        %v1006 = vpop.f32.mrb[0].mxu0
        %v1007 = vadd.f32 %v810, %v1006
        %1008 = vmatprep.mubr.bf16.mxu0 0
        %1009 = vmatmul.mubr.bf16.gmra.mrb[0].mxu0 %v768
        %v1010 = vpop.f32.mrb[0].mxu0
        %v1011 = vadd.f32 %v806, %v1010
        %v1012 = vpop.f32.mrb[0].mxu0
        %v1013 = vadd.f32 %v810, %v1012
        %v1014 = vpop.f32.mrb[0].mxu0
        %v1015 = vadd.f32 %v806, %v1014
        %v1016 = vpop.f32.mrb[0].mxu0
        %v1017 = vadd.f32 %v810, %v1016
        %1018 = vdwg.mxu0
        %1019 = vmatprep.subr.bf16.mxu0 0
        %1020 = vmatpush1.bf16.msra.mxu0 %v900
        %1021 = vmatprep.subr.bf16.mxu0 0
        %1022 = vmatpush1.bf16.msra.mxu0 %v903
        %1023 = vmatprep.subr.bf16.mxu0 0
        %1024 = vmatpush1.bf16.msra.mxu0 %v906
        %1025 = vmatprep.subr.bf16.mxu0 0
        %1026 = vmatpush1.bf16.msra.mxu0 %v909
        %1027 = vmatprep.subr.bf16.mxu0 0
        %1028 = vmatpush1.bf16.msra.mxu0 %v912
        %1029 = vmatprep.subr.bf16.mxu0 0
        %1030 = vmatpush1.bf16.msra.mxu0 %v915
        %1031 = vmatprep.subr.bf16.mxu0 0
        %1032 = vmatpush1.bf16.msra.mxu0 %v918
        %1033 = vmatprep.subr.bf16.mxu0 0
        %1034 = vmatpush1.bf16.msra.mxu0 %v921
        %1035 = vmatprep.subr.bf16.mxu0 0
        %1036 = vmatpush1.bf16.msra.mxu0 0
        %1037 = vmatprep.subr.bf16.mxu0 0
        %1038 = vmatpush1.bf16.msra.mxu0 0
        %1039 = vmatprep.subr.bf16.mxu0 0
        %1040 = vmatpush1.bf16.msra.mxu0 0
        %1041 = vmatprep.subr.bf16.mxu0 0
        %1042 = vmatpush1.bf16.msra.mxu0 0
        %1043 = vmatprep.subr.bf16.mxu0 0
        %1044 = vmatpush1.bf16.msra.mxu0 0
        %1045 = vmatprep.subr.bf16.mxu0 0
        %1046 = vmatpush1.bf16.msra.mxu0 0
        %1047 = vmatprep.subr.bf16.mxu0 0
        %1048 = vmatpush1.bf16.msra.mxu0 0
        %1049 = vmatprep.subr.bf16.mxu0 0
        %1050 = vmatpush1.bf16.msra.mxu0 0
        %1051 = vmatprep.mubr.bf16.mxu0 0
        %1052 = vmatmul.mubr.bf16.gmra.mrb[0].mxu0 %v765
        %v1053 = vpop.f32.mrb[0].mxu0
        %v1054 = vadd.f32 %v814, %v1053
        %v1055 = vpop.f32.mrb[0].mxu0
        %v1056 = vpop.f32.mrb[0].mxu0
        %v1057 = vadd.f32 %v814, %v1056
        %v1058 = vpop.f32.mrb[0].mxu0
        %1059 = vmatprep.mubr.bf16.mxu0 0
        %1060 = vmatmul.mubr.bf16.gmra.mrb[0].mxu0 %v766
        %v1061 = vpop.f32.mrb[0].mxu0
        %v1062 = vadd.f32 %v814, %v1061
        %v1063 = vpop.f32.mrb[0].mxu0
        %v1064 = vpop.f32.mrb[0].mxu0
        %v1065 = vadd.f32 %v814, %v1064
        %v1066 = vpop.f32.mrb[0].mxu0
        %1067 = vmatprep.mubr.bf16.mxu0 0
        %1068 = vmatmul.mubr.bf16.gmra.mrb[0].mxu0 %v767
        %v1069 = vpop.f32.mrb[0].mxu0
        %v1070 = vadd.f32 %v814, %v1069
        %v1071 = vpop.f32.mrb[0].mxu0
        %v1072 = vpop.f32.mrb[0].mxu0
        %v1073 = vadd.f32 %v814, %v1072
        %v1074 = vpop.f32.mrb[0].mxu0
        %1075 = vmatprep.mubr.bf16.mxu0 0
        %1076 = vmatmul.mubr.bf16.gmra.mrb[0].mxu0 %v768
        %v1077 = vpop.f32.mrb[0].mxu0
        %v1078 = vadd.f32 %v814, %v1077
        %v1079 = vpop.f32.mrb[0].mxu0
        %v1080 = vpop.f32.mrb[0].mxu0
        %v1081 = vadd.f32 %v814, %v1080
        %v1082 = vpop.f32.mrb[0].mxu0
        %1083 = vdwg.mxu0
        %v1084 = vpack.c.bf16 %v985, %v981
        %v1085 = vpack.c.bf16 %v987, %v983
        %v1086 = vpack.c.bf16 %v1057, %v1054
        %v1087 = vpack.c.bf16 %v995, %v991
        %v1088 = vpack.c.bf16 %v997, %v993
        %v1089 = vpack.c.bf16 %v1065, %v1062
        %v1090 = vpack.c.bf16 %v1005, %v1001
        %v1091 = vpack.c.bf16 %v1007, %v1003
        %v1092 = vpack.c.bf16 %v1073, %v1070
        %v1093 = vpack.c.bf16 %v1015, %v1011
        %v1094 = vpack.c.bf16 %v1017, %v1013
        %v1095 = vpack.c.bf16 %v1081, %v1078
        %1096 = vst [vmem:[#allocation2] sm:$0xff] %v1084
        %1097 = vst [vmem:[#allocation2 + $0x8] sm:$0xff] %v1085
        %1098 = vst [vmem:[#allocation2 + $0x10] sm:$0xff] %v1086
        %1099 = vst [vmem:[#allocation2 + $0x18] sm:$0xff] %v1087
        %1100 = vst [vmem:[#allocation2 + $0x20] sm:$0xff] %v1088
        %1101 = vst [vmem:[#allocation2 + $0x28] sm:$0xff] %v1089
        %1102 = vst [vmem:[#allocation2 + $0x30] sm:$0xff] %v1090
        %1103 = vst [vmem:[#allocation2 + $0x38] sm:$0xff] %v1091
        %1104 = vst [vmem:[#allocation2 + $0x40] sm:$0xff] %v1092
        %1105 = vst [vmem:[#allocation2 + $0x48] sm:$0xff] %v1093
        %1106 = vst [vmem:[#allocation2 + $0x50] sm:$0xff] %v1094
        %1107 = vst [vmem:[#allocation2 + $0x58] sm:$0xff] %v1095
        %v1108 = vld [vmem:[#allocation2 + $0x8] sm:$0xff]
        %v1109 = vld [vmem:[#allocation2 + $0x20] sm:$0xff]
        %v1110 = vld [vmem:[#allocation2 + $0x38] sm:$0xff]
        %v1111 = vld [vmem:[#allocation2 + $0x50] sm:$0xff]
        %v1112 = vld [vmem:[#allocation2 + $0x10] sm:$0xff]
        %v1113 = vld [vmem:[#allocation2 + $0x28] sm:$0xff]
        %v1114 = vld [vmem:[#allocation2 + $0x40] sm:$0xff]
        %v1115 = vld [vmem:[#allocation2 + $0x58] sm:$0xff]
        %v1116 = vld [vmem:[#allocation2] sm:$0xff]
        %v1117 = vld [vmem:[#allocation2 + $0x18] sm:$0xff]
        %v1118 = vld [vmem:[#allocation2 + $0x30] sm:$0xff]
        %v1119 = vld [vmem:[#allocation2 + $0x48] sm:$0xff]
        %vm1120 = vcmask 523264
        %v1122 = vsel %vm1120, %v1116, 0
        %v1125 = vsel %vm1120, %v1117, 0
        %v1128 = vsel %vm1120, %v1118, 0
        %v1131 = vsel %vm1120, %v1119, 0
        %v1134 = vsel %vm1120, %v1108, 0
        %v1137 = vsel %vm1120, %v1109, 0
        %v1140 = vsel %vm1120, %v1110, 0
        %v1143 = vsel %vm1120, %v1111, 0
        %1145 = vmatprep.subr.bf16.mxu0 0
        %1146 = vmatpush1.bf16.xpose.msra.mxu0 %v1134
        %1147 = vmatprep.subr.bf16.mxu0 0
        %1148 = vmatpush1.bf16.xpose.msra.mxu0 %v1137
        %1149 = vmatprep.subr.bf16.mxu0 0
        %1150 = vmatpush1.bf16.xpose.msra.mxu0 %v1140
        %1151 = vmatprep.subr.bf16.mxu0 0
        %1152 = vmatpush1.bf16.xpose.msra.mxu0 %v1143
        %1153 = vmatprep.subr.bf16.mxu0 0
        %1154 = vmatpush1.bf16.xpose.msra.mxu0 0
        %1155 = vmatprep.subr.bf16.mxu0 0
        %1156 = vmatpush1.bf16.xpose.msra.mxu0 0
        %1157 = vmatprep.subr.bf16.mxu0 0
        %1158 = vmatpush1.bf16.xpose.msra.mxu0 0
        %1159 = vmatprep.subr.bf16.mxu0 0
        %1160 = vmatpush1.bf16.xpose.msra.mxu0 0
        %1161 = vmatprep.subr.bf16.mxu0 0
        %1162 = vmatpush1.bf16.xpose.msra.mxu0 0
        %1163 = vmatprep.subr.bf16.mxu0 0
        %1164 = vmatpush1.bf16.xpose.msra.mxu0 0
        %1165 = vmatprep.subr.bf16.mxu0 0
        %1166 = vmatpush1.bf16.xpose.msra.mxu0 0
        %1167 = vmatprep.subr.bf16.mxu0 0
        %1168 = vmatpush1.bf16.xpose.msra.mxu0 0
        %1169 = vmatprep.subr.bf16.mxu0 0
        %1170 = vmatpush1.bf16.xpose.msra.mxu0 0
        %1171 = vmatprep.subr.bf16.mxu0 0
        %1172 = vmatpush1.bf16.xpose.msra.mxu0 0
        %1173 = vmatprep.subr.bf16.mxu0 0
        %1174 = vmatpush1.bf16.xpose.msra.mxu0 0
        %1175 = vmatprep.subr.bf16.mxu0 0
        %1176 = vmatpush1.bf16.xpose.msra.mxu0 0
        %1177 = vmatprep.mubr.bf16.mxu0 0
        %1178 = vmatmul.mubr.bf16.gmra.mrb[0].mxu0 %v1122
        %v1179 = vpop.f32.mrb[0].mxu0
        %v1180 = vadd.f32 0.0, %v1179
        %v1181 = vpop.f32.mrb[0].mxu0
        %v1182 = vpop.f32.mrb[0].mxu0
        %v1183 = vadd.f32 0.0, %v1182
        %v1184 = vpop.f32.mrb[0].mxu0
        %1185 = vmatprep.mubr.bf16.mxu0 0
        %1186 = vmatmul.mubr.bf16.gmra.mrb[0].mxu0 %v1125
        %v1187 = vpop.f32.mrb[0].mxu0
        %v1188 = vadd.f32 0.0, %v1187
        %v1189 = vpop.f32.mrb[0].mxu0
        %v1190 = vpop.f32.mrb[0].mxu0
        %v1191 = vadd.f32 0.0, %v1190
        %v1192 = vpop.f32.mrb[0].mxu0
        %1193 = vmatprep.mubr.bf16.mxu0 0
        %1194 = vmatmul.mubr.bf16.gmra.mrb[0].mxu0 %v1128
        %v1195 = vpop.f32.mrb[0].mxu0
        %v1196 = vadd.f32 0.0, %v1195
        %v1197 = vpop.f32.mrb[0].mxu0
        %v1198 = vpop.f32.mrb[0].mxu0
        %v1199 = vadd.f32 0.0, %v1198
        %v1200 = vpop.f32.mrb[0].mxu0
        %1201 = vmatprep.mubr.bf16.mxu0 0
        %1202 = vmatmul.mubr.bf16.gmra.mrb[0].mxu0 %v1131
        %v1203 = vpop.f32.mrb[0].mxu0
        %v1204 = vadd.f32 0.0, %v1203
        %v1205 = vpop.f32.mrb[0].mxu0
        %v1206 = vpop.f32.mrb[0].mxu0
        %v1207 = vadd.f32 0.0, %v1206
        %v1208 = vpop.f32.mrb[0].mxu0
        %1209 = vdwg.mxu0
        %v1210 = vsel %vm1120, %v1180, -inf
        %1211 = vmax.xlane.f32.xlu0 %v1210
        %v1212 = vpop.xlane.xlu0 %1211
        %v1213 = vsel %vm1120, %v1183, -inf
        %1214 = vmax.xlane.f32.xlu0 %v1213
        %v1215 = vpop.xlane.xlu0 %1214
        %v1216 = vsel %vm1120, %v1188, -inf
        %1217 = vmax.xlane.f32.xlu0 %v1216
        %v1218 = vpop.xlane.xlu0 %1217
        %v1219 = vsel %vm1120, %v1191, -inf
        %1220 = vmax.xlane.f32.xlu0 %v1219
        %v1221 = vpop.xlane.xlu0 %1220
        %v1222 = vsel %vm1120, %v1196, -inf
        %1223 = vmax.xlane.f32.xlu0 %v1222
        %v1224 = vpop.xlane.xlu0 %1223
        %v1225 = vsel %vm1120, %v1199, -inf
        %1226 = vmax.xlane.f32.xlu0 %v1225
        %v1227 = vpop.xlane.xlu0 %1226
        %v1228 = vsel %vm1120, %v1204, -inf
        %1229 = vmax.xlane.f32.xlu0 %v1228
        %v1230 = vpop.xlane.xlu0 %1229
        %v1231 = vsel %vm1120, %v1207, -inf
        %1232 = vmax.xlane.f32.xlu0 %v1231
        %v1233 = vpop.xlane.xlu0 %1232
        %v1234 = vsub.f32 %v1180, %v1212
        %v1235 = vsub.f32 %v1183, %v1215
        %v1236 = vsub.f32 %v1188, %v1218
        %v1237 = vsub.f32 %v1191, %v1221
        %v1238 = vsub.f32 %v1196, %v1224
        %v1239 = vsub.f32 %v1199, %v1227
        %v1240 = vsub.f32 %v1204, %v1230
        %v1241 = vsub.f32 %v1207, %v1233
        %v1242 = vmul.f32 %v1234, 1.442695
        %v1243 = vpow.pop %v1242
        %v1244 = vmul.f32 %v1235, 1.442695
        %v1245 = vpow.pop %v1244
        %v1246 = vmul.f32 %v1236, 1.442695
        %v1247 = vpow.pop %v1246
        %v1248 = vmul.f32 %v1237, 1.442695
        %v1249 = vpow.pop %v1248
        %v1250 = vmul.f32 %v1238, 1.442695
        %v1251 = vpow.pop %v1250
        %v1252 = vmul.f32 %v1239, 1.442695
        %v1253 = vpow.pop %v1252
        %v1254 = vmul.f32 %v1240, 1.442695
        %v1255 = vpow.pop %v1254
        %v1256 = vmul.f32 %v1241, 1.442695
        %v1257 = vpow.pop %v1256
        %v1258 = vsel %vm1120, %v1243, 0.0
        %1259 = vadd.xlane.f32.xlu0 %v1258
        %v1260 = vpop.xlane.xlu0 %1259
        %v1261 = vsel %vm1120, %v1245, 0.0
        %1262 = vadd.xlane.f32.xlu0 %v1261
        %v1263 = vpop.xlane.xlu0 %1262
        %v1264 = vsel %vm1120, %v1247, 0.0
        %1265 = vadd.xlane.f32.xlu0 %v1264
        %v1266 = vpop.xlane.xlu0 %1265
        %v1267 = vsel %vm1120, %v1249, 0.0
        %1268 = vadd.xlane.f32.xlu0 %v1267
        %v1269 = vpop.xlane.xlu0 %1268
        %v1270 = vsel %vm1120, %v1251, 0.0
        %1271 = vadd.xlane.f32.xlu0 %v1270
        %v1272 = vpop.xlane.xlu0 %1271
        %v1273 = vsel %vm1120, %v1253, 0.0
        %1274 = vadd.xlane.f32.xlu0 %v1273
        %v1275 = vpop.xlane.xlu0 %1274
        %v1276 = vsel %vm1120, %v1255, 0.0
        %1277 = vadd.xlane.f32.xlu0 %v1276
        %v1278 = vpop.xlane.xlu0 %1277
        %v1279 = vsel %vm1120, %v1257, 0.0
        %1280 = vadd.xlane.f32.xlu0 %v1279
        %v1281 = vpop.xlane.xlu0 %1280
        %v1282 = vrcp.pop %v1260
        %v1283 = vrcp.pop %v1263
        %v1284 = vrcp.pop %v1266
        %v1285 = vrcp.pop %v1269
        %v1286 = vrcp.pop %v1272
        %v1287 = vrcp.pop %v1275
        %v1288 = vrcp.pop %v1278
        %v1289 = vrcp.pop %v1281
        %v1290 = vpack.c.bf16 %v1245, %v1243
        %v1291 = vpack.c.bf16 %v1249, %v1247
        %v1292 = vpack.c.bf16 %v1253, %v1251
        %v1293 = vpack.c.bf16 %v1257, %v1255
        %v1295 = vsel %vm1120, %v1290, 0
        %v1298 = vsel %vm1120, %v1291, 0
        %v1301 = vsel %vm1120, %v1292, 0
        %v1304 = vsel %vm1120, %v1293, 0
        %1306 = vmatprep.subr.bf16.mxu0 0
        %1307 = vmatpush1.bf16.msra.mxu0 %v1112
        %1308 = vmatprep.subr.bf16.mxu0 0
        %1309 = vmatpush1.bf16.msra.mxu0 %v1113
        %1310 = vmatprep.subr.bf16.mxu0 0
        %1311 = vmatpush1.bf16.msra.mxu0 %v1114
        %1312 = vmatprep.subr.bf16.mxu0 0
        %1313 = vmatpush1.bf16.msra.mxu0 %v1115
        %1314 = vmatprep.subr.bf16.mxu0 0
        %1315 = vmatpush1.bf16.msra.mxu0 0
        %1316 = vmatprep.subr.bf16.mxu0 0
        %1317 = vmatpush1.bf16.msra.mxu0 0
        %1318 = vmatprep.subr.bf16.mxu0 0
        %1319 = vmatpush1.bf16.msra.mxu0 0
        %1320 = vmatprep.subr.bf16.mxu0 0
        %1321 = vmatpush1.bf16.msra.mxu0 0
        %1322 = vmatprep.subr.bf16.mxu0 0
        %1323 = vmatpush1.bf16.msra.mxu0 0
        %1324 = vmatprep.subr.bf16.mxu0 0
        %1325 = vmatpush1.bf16.msra.mxu0 0
        %1326 = vmatprep.subr.bf16.mxu0 0
        %1327 = vmatpush1.bf16.msra.mxu0 0
        %1328 = vmatprep.subr.bf16.mxu0 0
        %1329 = vmatpush1.bf16.msra.mxu0 0
        %1330 = vmatprep.subr.bf16.mxu0 0
        %1331 = vmatpush1.bf16.msra.mxu0 0
        %1332 = vmatprep.subr.bf16.mxu0 0
        %1333 = vmatpush1.bf16.msra.mxu0 0
        %1334 = vmatprep.subr.bf16.mxu0 0
        %1335 = vmatpush1.bf16.msra.mxu0 0
        %1336 = vmatprep.subr.bf16.mxu0 0
        %1337 = vmatpush1.bf16.msra.mxu0 0
        %1338 = vmatprep.mubr.bf16.mxu0 0
        %1339 = vmatmul.mubr.bf16.gmra.mrb[0].mxu0 %v1295
        %v1340 = vpop.f32.mrb[0].mxu0
        %v1341 = vadd.f32 0.0, %v1340
        %v1342 = vpop.f32.mrb[0].mxu0
        %v1343 = vpop.f32.mrb[0].mxu0
        %v1344 = vadd.f32 0.0, %v1343
        %v1345 = vpop.f32.mrb[0].mxu0
        %1346 = vmatprep.mubr.bf16.mxu0 0
        %1347 = vmatmul.mubr.bf16.gmra.mrb[0].mxu0 %v1298
        %v1348 = vpop.f32.mrb[0].mxu0
        %v1349 = vadd.f32 0.0, %v1348
        %v1350 = vpop.f32.mrb[0].mxu0
        %v1351 = vpop.f32.mrb[0].mxu0
        %v1352 = vadd.f32 0.0, %v1351
        %v1353 = vpop.f32.mrb[0].mxu0
        %1354 = vmatprep.mubr.bf16.mxu0 0
        %1355 = vmatmul.mubr.bf16.gmra.mrb[0].mxu0 %v1301
        %v1356 = vpop.f32.mrb[0].mxu0
        %v1357 = vadd.f32 0.0, %v1356
        %v1358 = vpop.f32.mrb[0].mxu0
        %v1359 = vpop.f32.mrb[0].mxu0
        %v1360 = vadd.f32 0.0, %v1359
        %v1361 = vpop.f32.mrb[0].mxu0
        %1362 = vmatprep.mubr.bf16.mxu0 0
        %1363 = vmatmul.mubr.bf16.gmra.mrb[0].mxu0 %v1304
        %v1364 = vpop.f32.mrb[0].mxu0
        %v1365 = vadd.f32 0.0, %v1364
        %v1366 = vpop.f32.mrb[0].mxu0
        %v1367 = vpop.f32.mrb[0].mxu0
        %v1368 = vadd.f32 0.0, %v1367
        %v1369 = vpop.f32.mrb[0].mxu0
        %1370 = vdwg.mxu0
        %v1371 = vmul.f32 %v1341, %v1282
        %v1372 = vmul.f32 %v1344, %v1283
        %v1373 = vmul.f32 %v1349, %v1284
        %v1374 = vmul.f32 %v1352, %v1285
        %v1375 = vmul.f32 %v1357, %v1286
        %v1376 = vmul.f32 %v1360, %v1287
        %v1377 = vmul.f32 %v1365, %v1288
        %v1378 = vmul.f32 %v1368, %v1289
        %v1379 = vpack.c.bf16 %v1372, %v1371
        %v1380 = vpack.c.bf16 %v1374, %v1373
        %v1381 = vpack.c.bf16 %v1376, %v1375
        %v1382 = vpack.c.bf16 %v1378, %v1377
        %1383 = vst.msk [vmem:[#allocation3] sm:$0xff] %vm1120, %v1379
        %1384 = vst.msk [vmem:[#allocation3 + $0x8] sm:$0xff] %vm1120, %v1380
        %1385 = vst.msk [vmem:[#allocation3 + $0x10] sm:$0xff] %vm1120, %v1381
        %1386 = vst.msk [vmem:[#allocation3 + $0x18] sm:$0xff] %vm1120, %v1382
        %v1387 = vld [vmem:[#allocation2 + $0x8] sm:$0xff]
        %v1388 = vld [vmem:[#allocation2 + $0x20] sm:$0xff]
        %v1389 = vld [vmem:[#allocation2 + $0x38] sm:$0xff]
        %v1390 = vld [vmem:[#allocation2 + $0x50] sm:$0xff]
        %v1391 = vld [vmem:[#allocation2 + $0x10] sm:$0xff]
        %v1392 = vld [vmem:[#allocation2 + $0x28] sm:$0xff]
        %v1393 = vld [vmem:[#allocation2 + $0x40] sm:$0xff]
        %v1394 = vld [vmem:[#allocation2 + $0x58] sm:$0xff]
        %v1395 = vld [vmem:[#allocation2] sm:$0xff]
        %v1396 = vld [vmem:[#allocation2 + $0x18] sm:$0xff]
        %v1397 = vld [vmem:[#allocation2 + $0x30] sm:$0xff]
        %v1398 = vld [vmem:[#allocation2 + $0x48] sm:$0xff]
        %1403 = vrot.lane.b32.xlu0 %v1395, 64
        %v1404 = vpop.permute.xlu0 %1403
        %1405 = vrot.lane.b32.xlu0 %v1396, 64
        %v1406 = vpop.permute.xlu0 %1405
        %1407 = vrot.lane.b32.xlu0 %v1397, 64
        %v1408 = vpop.permute.xlu0 %1407
        %1409 = vrot.lane.b32.xlu0 %v1398, 64
        %v1410 = vpop.permute.xlu0 %1409
        %1415 = vrot.lane.b32.xlu0 %v1387, 64
        %v1416 = vpop.permute.xlu0 %1415
        %1417 = vrot.lane.b32.xlu0 %v1388, 64
        %v1418 = vpop.permute.xlu0 %1417
        %1419 = vrot.lane.b32.xlu0 %v1389, 64
        %v1420 = vpop.permute.xlu0 %1419
        %1421 = vrot.lane.b32.xlu0 %v1390, 64
        %v1422 = vpop.permute.xlu0 %1421
        %v1424 = vsel %vm1120, %v1404, 0
        %v1427 = vsel %vm1120, %v1406, 0
        %v1430 = vsel %vm1120, %v1408, 0
        %v1433 = vsel %vm1120, %v1410, 0
        %v1436 = vsel %vm1120, %v1416, 0
        %v1439 = vsel %vm1120, %v1418, 0
        %v1442 = vsel %vm1120, %v1420, 0
        %v1445 = vsel %vm1120, %v1422, 0
        %1447 = vmatprep.subr.bf16.mxu0 0
        %1448 = vmatpush1.bf16.xpose.msra.mxu0 %v1436
        %1449 = vmatprep.subr.bf16.mxu0 0
        %1450 = vmatpush1.bf16.xpose.msra.mxu0 %v1439
        %1451 = vmatprep.subr.bf16.mxu0 0
        %1452 = vmatpush1.bf16.xpose.msra.mxu0 %v1442
        %1453 = vmatprep.subr.bf16.mxu0 0
        %1454 = vmatpush1.bf16.xpose.msra.mxu0 %v1445
        %1455 = vmatprep.subr.bf16.mxu0 0
        %1456 = vmatpush1.bf16.xpose.msra.mxu0 0
        %1457 = vmatprep.subr.bf16.mxu0 0
        %1458 = vmatpush1.bf16.xpose.msra.mxu0 0
        %1459 = vmatprep.subr.bf16.mxu0 0
        %1460 = vmatpush1.bf16.xpose.msra.mxu0 0
        %1461 = vmatprep.subr.bf16.mxu0 0
        %1462 = vmatpush1.bf16.xpose.msra.mxu0 0
        %1463 = vmatprep.subr.bf16.mxu0 0
        %1464 = vmatpush1.bf16.xpose.msra.mxu0 0
        %1465 = vmatprep.subr.bf16.mxu0 0
        %1466 = vmatpush1.bf16.xpose.msra.mxu0 0
        %1467 = vmatprep.subr.bf16.mxu0 0
        %1468 = vmatpush1.bf16.xpose.msra.mxu0 0
        %1469 = vmatprep.subr.bf16.mxu0 0
        %1470 = vmatpush1.bf16.xpose.msra.mxu0 0
        %1471 = vmatprep.subr.bf16.mxu0 0
        %1472 = vmatpush1.bf16.xpose.msra.mxu0 0
        %1473 = vmatprep.subr.bf16.mxu0 0
        %1474 = vmatpush1.bf16.xpose.msra.mxu0 0
        %1475 = vmatprep.subr.bf16.mxu0 0
        %1476 = vmatpush1.bf16.xpose.msra.mxu0 0
        %1477 = vmatprep.subr.bf16.mxu0 0
        %1478 = vmatpush1.bf16.xpose.msra.mxu0 0
        %1479 = vmatprep.mubr.bf16.mxu0 0
        %1480 = vmatmul.mubr.bf16.gmra.mrb[0].mxu0 %v1424
        %v1481 = vpop.f32.mrb[0].mxu0
        %v1482 = vadd.f32 0.0, %v1481
        %v1483 = vpop.f32.mrb[0].mxu0
        %v1484 = vpop.f32.mrb[0].mxu0
        %v1485 = vadd.f32 0.0, %v1484
        %v1486 = vpop.f32.mrb[0].mxu0
        %1487 = vmatprep.mubr.bf16.mxu0 0
        %1488 = vmatmul.mubr.bf16.gmra.mrb[0].mxu0 %v1427
        %v1489 = vpop.f32.mrb[0].mxu0
        %v1490 = vadd.f32 0.0, %v1489
        %v1491 = vpop.f32.mrb[0].mxu0
        %v1492 = vpop.f32.mrb[0].mxu0
        %v1493 = vadd.f32 0.0, %v1492
        %v1494 = vpop.f32.mrb[0].mxu0
        %1495 = vmatprep.mubr.bf16.mxu0 0
        %1496 = vmatmul.mubr.bf16.gmra.mrb[0].mxu0 %v1430
        %v1497 = vpop.f32.mrb[0].mxu0
        %v1498 = vadd.f32 0.0, %v1497
        %v1499 = vpop.f32.mrb[0].mxu0
        %v1500 = vpop.f32.mrb[0].mxu0
        %v1501 = vadd.f32 0.0, %v1500
        %v1502 = vpop.f32.mrb[0].mxu0
        %1503 = vmatprep.mubr.bf16.mxu0 0
        %1504 = vmatmul.mubr.bf16.gmra.mrb[0].mxu0 %v1433
        %v1505 = vpop.f32.mrb[0].mxu0
        %v1506 = vadd.f32 0.0, %v1505
        %v1507 = vpop.f32.mrb[0].mxu0
        %v1508 = vpop.f32.mrb[0].mxu0
        %v1509 = vadd.f32 0.0, %v1508
        %v1510 = vpop.f32.mrb[0].mxu0
        %1511 = vdwg.mxu0
        %v1512 = vsel %vm1120, %v1482, -inf
        %1513 = vmax.xlane.f32.xlu0 %v1512
        %v1514 = vpop.xlane.xlu0 %1513
        %v1515 = vsel %vm1120, %v1485, -inf
        %1516 = vmax.xlane.f32.xlu0 %v1515
        %v1517 = vpop.xlane.xlu0 %1516
        %v1518 = vsel %vm1120, %v1490, -inf
        %1519 = vmax.xlane.f32.xlu0 %v1518
        %v1520 = vpop.xlane.xlu0 %1519
        %v1521 = vsel %vm1120, %v1493, -inf
        %1522 = vmax.xlane.f32.xlu0 %v1521
        %v1523 = vpop.xlane.xlu0 %1522
        %v1524 = vsel %vm1120, %v1498, -inf
        %1525 = vmax.xlane.f32.xlu0 %v1524
        %v1526 = vpop.xlane.xlu0 %1525
        %v1527 = vsel %vm1120, %v1501, -inf
        %1528 = vmax.xlane.f32.xlu0 %v1527
        %v1529 = vpop.xlane.xlu0 %1528
        %v1530 = vsel %vm1120, %v1506, -inf
        %1531 = vmax.xlane.f32.xlu0 %v1530
        %v1532 = vpop.xlane.xlu0 %1531
        %v1533 = vsel %vm1120, %v1509, -inf
        %1534 = vmax.xlane.f32.xlu0 %v1533
        %v1535 = vpop.xlane.xlu0 %1534
        %v1536 = vsub.f32 %v1482, %v1514
        %v1537 = vsub.f32 %v1485, %v1517
        %v1538 = vsub.f32 %v1490, %v1520
        %v1539 = vsub.f32 %v1493, %v1523
        %v1540 = vsub.f32 %v1498, %v1526
        %v1541 = vsub.f32 %v1501, %v1529
        %v1542 = vsub.f32 %v1506, %v1532
        %v1543 = vsub.f32 %v1509, %v1535
        %v1544 = vmul.f32 %v1536, 1.442695
        %v1545 = vpow.pop %v1544
        %v1546 = vmul.f32 %v1537, 1.442695
        %v1547 = vpow.pop %v1546
        %v1548 = vmul.f32 %v1538, 1.442695
        %v1549 = vpow.pop %v1548
        %v1550 = vmul.f32 %v1539, 1.442695
        %v1551 = vpow.pop %v1550
        %v1552 = vmul.f32 %v1540, 1.442695
        %v1553 = vpow.pop %v1552
        %v1554 = vmul.f32 %v1541, 1.442695
        %v1555 = vpow.pop %v1554
        %v1556 = vmul.f32 %v1542, 1.442695
        %v1557 = vpow.pop %v1556
        %v1558 = vmul.f32 %v1543, 1.442695
        %v1559 = vpow.pop %v1558
        %v1560 = vsel %vm1120, %v1545, 0.0
        %1561 = vadd.xlane.f32.xlu0 %v1560
        %v1562 = vpop.xlane.xlu0 %1561
        %v1563 = vsel %vm1120, %v1547, 0.0
        %1564 = vadd.xlane.f32.xlu0 %v1563
        %v1565 = vpop.xlane.xlu0 %1564
        %v1566 = vsel %vm1120, %v1549, 0.0
        %1567 = vadd.xlane.f32.xlu0 %v1566
        %v1568 = vpop.xlane.xlu0 %1567
        %v1569 = vsel %vm1120, %v1551, 0.0
        %1570 = vadd.xlane.f32.xlu0 %v1569
        %v1571 = vpop.xlane.xlu0 %1570
        %v1572 = vsel %vm1120, %v1553, 0.0
        %1573 = vadd.xlane.f32.xlu0 %v1572
        %v1574 = vpop.xlane.xlu0 %1573
        %v1575 = vsel %vm1120, %v1555, 0.0
        %1576 = vadd.xlane.f32.xlu0 %v1575
        %v1577 = vpop.xlane.xlu0 %1576
        %v1578 = vsel %vm1120, %v1557, 0.0
        %1579 = vadd.xlane.f32.xlu0 %v1578
        %v1580 = vpop.xlane.xlu0 %1579
        %v1581 = vsel %vm1120, %v1559, 0.0
        %1582 = vadd.xlane.f32.xlu0 %v1581
        %v1583 = vpop.xlane.xlu0 %1582
        %v1584 = vrcp.pop %v1562
        %v1585 = vrcp.pop %v1565
        %v1586 = vrcp.pop %v1568
        %v1587 = vrcp.pop %v1571
        %v1588 = vrcp.pop %v1574
        %v1589 = vrcp.pop %v1577
        %v1590 = vrcp.pop %v1580
        %v1591 = vrcp.pop %v1583
        %v1592 = vpack.c.bf16 %v1547, %v1545
        %v1593 = vpack.c.bf16 %v1551, %v1549
        %v1594 = vpack.c.bf16 %v1555, %v1553
        %v1595 = vpack.c.bf16 %v1559, %v1557
        %1600 = vrot.lane.b32.xlu0 %v1391, 64
        %v1601 = vpop.permute.xlu0 %1600
        %1602 = vrot.lane.b32.xlu0 %v1392, 64
        %v1603 = vpop.permute.xlu0 %1602
        %1604 = vrot.lane.b32.xlu0 %v1393, 64
        %v1605 = vpop.permute.xlu0 %1604
        %1606 = vrot.lane.b32.xlu0 %v1394, 64
        %v1607 = vpop.permute.xlu0 %1606
        %v1613 = vsel %vm1120, %v1592, 0
        %v1616 = vsel %vm1120, %v1593, 0
        %v1619 = vsel %vm1120, %v1594, 0
        %v1622 = vsel %vm1120, %v1595, 0
        %1624 = vmatprep.subr.bf16.mxu0 0
        %1625 = vmatpush1.bf16.msra.mxu0 %v1601
        %1626 = vmatprep.subr.bf16.mxu0 0
        %1627 = vmatpush1.bf16.msra.mxu0 %v1603
        %1628 = vmatprep.subr.bf16.mxu0 0
        %1629 = vmatpush1.bf16.msra.mxu0 %v1605
        %1630 = vmatprep.subr.bf16.mxu0 0
        %1631 = vmatpush1.bf16.msra.mxu0 %v1607
        %1632 = vmatprep.subr.bf16.mxu0 0
        %1633 = vmatpush1.bf16.msra.mxu0 0
        %1634 = vmatprep.subr.bf16.mxu0 0
        %1635 = vmatpush1.bf16.msra.mxu0 0
        %1636 = vmatprep.subr.bf16.mxu0 0
        %1637 = vmatpush1.bf16.msra.mxu0 0
        %1638 = vmatprep.subr.bf16.mxu0 0
        %1639 = vmatpush1.bf16.msra.mxu0 0
        %1640 = vmatprep.subr.bf16.mxu0 0
        %1641 = vmatpush1.bf16.msra.mxu0 0
        %1642 = vmatprep.subr.bf16.mxu0 0
        %1643 = vmatpush1.bf16.msra.mxu0 0
        %1644 = vmatprep.subr.bf16.mxu0 0
        %1645 = vmatpush1.bf16.msra.mxu0 0
        %1646 = vmatprep.subr.bf16.mxu0 0
        %1647 = vmatpush1.bf16.msra.mxu0 0
        %1648 = vmatprep.subr.bf16.mxu0 0
        %1649 = vmatpush1.bf16.msra.mxu0 0
        %1650 = vmatprep.subr.bf16.mxu0 0
        %1651 = vmatpush1.bf16.msra.mxu0 0
        %1652 = vmatprep.subr.bf16.mxu0 0
        %1653 = vmatpush1.bf16.msra.mxu0 0
        %1654 = vmatprep.subr.bf16.mxu0 0
        %1655 = vmatpush1.bf16.msra.mxu0 0
        %1656 = vmatprep.mubr.bf16.mxu0 0
        %1657 = vmatmul.mubr.bf16.gmra.mrb[0].mxu0 %v1613
        %v1658 = vpop.f32.mrb[0].mxu0
        %v1659 = vadd.f32 0.0, %v1658
        %v1660 = vpop.f32.mrb[0].mxu0
        %v1661 = vpop.f32.mrb[0].mxu0
        %v1662 = vadd.f32 0.0, %v1661
        %v1663 = vpop.f32.mrb[0].mxu0
        %1664 = vmatprep.mubr.bf16.mxu0 0
        %1665 = vmatmul.mubr.bf16.gmra.mrb[0].mxu0 %v1616
        %v1666 = vpop.f32.mrb[0].mxu0
        %v1667 = vadd.f32 0.0, %v1666
        %v1668 = vpop.f32.mrb[0].mxu0
        %v1669 = vpop.f32.mrb[0].mxu0
        %v1670 = vadd.f32 0.0, %v1669
        %v1671 = vpop.f32.mrb[0].mxu0
        %1672 = vmatprep.mubr.bf16.mxu0 0
        %1673 = vmatmul.mubr.bf16.gmra.mrb[0].mxu0 %v1619
        %v1674 = vpop.f32.mrb[0].mxu0
        %v1675 = vadd.f32 0.0, %v1674
        %v1676 = vpop.f32.mrb[0].mxu0
        %v1677 = vpop.f32.mrb[0].mxu0
        %v1678 = vadd.f32 0.0, %v1677
        %v1679 = vpop.f32.mrb[0].mxu0
        %1680 = vmatprep.mubr.bf16.mxu0 0
        %1681 = vmatmul.mubr.bf16.gmra.mrb[0].mxu0 %v1622
        %v1682 = vpop.f32.mrb[0].mxu0
        %v1683 = vadd.f32 0.0, %v1682
        %v1684 = vpop.f32.mrb[0].mxu0
        %v1685 = vpop.f32.mrb[0].mxu0
        %v1686 = vadd.f32 0.0, %v1685
        %v1687 = vpop.f32.mrb[0].mxu0
        %1688 = vdwg.mxu0
        %v1689 = vmul.f32 %v1659, %v1584
        %v1690 = vmul.f32 %v1662, %v1585
        %v1691 = vmul.f32 %v1667, %v1586
        %v1692 = vmul.f32 %v1670, %v1587
        %v1693 = vmul.f32 %v1675, %v1588
        %v1694 = vmul.f32 %v1678, %v1589
        %v1695 = vmul.f32 %v1683, %v1590
        %v1696 = vmul.f32 %v1686, %v1591
        %v1697 = vpack.c.bf16 %v1690, %v1689
        %v1698 = vpack.c.bf16 %v1692, %v1691
        %v1699 = vpack.c.bf16 %v1694, %v1693
        %v1700 = vpack.c.bf16 %v1696, %v1695
        %1705 = vrot.lane.b32.xlu0 %v1697, 64
        %v1706 = vpop.permute.xlu0 %1705
        %1707 = vrot.lane.b32.xlu0 %v1698, 64
        %v1708 = vpop.permute.xlu0 %1707
        %1709 = vrot.lane.b32.xlu0 %v1699, 64
        %v1710 = vpop.permute.xlu0 %1709
        %1711 = vrot.lane.b32.xlu0 %v1700, 64
        %v1712 = vpop.permute.xlu0 %1711
        %vm1717 = vcmask 1048064
        %1718 = vst.msk [vmem:[#allocation3] sm:$0xff] %vm1717, %v1706
        %1719 = vst.msk [vmem:[#allocation3 + $0x8] sm:$0xff] %vm1717, %v1708
        %1720 = vst.msk [vmem:[#allocation3 + $0x10] sm:$0xff] %vm1717, %v1710
        %1721 = vst.msk [vmem:[#allocation3 + $0x18] sm:$0xff] %vm1717, %v1712
        %v1722 = vld [vmem:[#allocation3] sm:$0xff]
        %v1723 = vld [vmem:[#allocation3 + $0x8] sm:$0xff]
        %v1724 = vld [vmem:[#allocation3 + $0x10] sm:$0xff]
        %v1725 = vld [vmem:[#allocation3 + $0x18] sm:$0xff]
        %v1726 = vld [vmem:[#allocation7] sm:$0xf]
        %v1727 = vld [vmem:[#allocation7 + $0x4] sm:$0xf]
        %v1728 = vld [vmem:[#allocation7 + $0x8] sm:$0xf]
        %v1729 = vld [vmem:[#allocation7 + $0xc] sm:$0xf]
        %v1730 = vld [vmem:[#allocation7 + $0x10] sm:$0xf]
        %v1731 = vld [vmem:[#allocation7 + $0x14] sm:$0xf]
        %v1732 = vld [vmem:[#allocation7 + $0x18] sm:$0xf]
        %v1733 = vld [vmem:[#allocation7 + $0x1c] sm:$0xf]
        %v1734 = vld [vmem:[#allocation7 + $0x20] sm:$0xf]
        %v1735 = vld [vmem:[#allocation7 + $0x24] sm:$0xf]
        %v1736 = vld [vmem:[#allocation7 + $0x28] sm:$0xf]
        %v1737 = vld [vmem:[#allocation7 + $0x2c] sm:$0xf]
        %v1738 = vld [vmem:[#allocation7 + $0x30] sm:$0xf]
        %v1739 = vld [vmem:[#allocation7 + $0x34] sm:$0xf]
        %v1740 = vld [vmem:[#allocation7 + $0x38] sm:$0xf]
        %v1741 = vld [vmem:[#allocation7 + $0x3c] sm:$0xf]
        %v1758 = vunpack.c.l.b16 %v1726
        %v1759 = vunpack.c.l.b16 %v1727
        %v1760 = vunpack.c.l.b16 %v1728
        %v1761 = vunpack.c.l.b16 %v1729
        %v1762 = vunpack.c.l.b16 %v1730
        %v1763 = vunpack.c.l.b16 %v1731
        %v1764 = vunpack.c.l.b16 %v1732
        %v1765 = vunpack.c.l.b16 %v1733
        %v1766 = vunpack.c.l.b16 %v1734
        %v1767 = vunpack.c.l.b16 %v1735
        %v1768 = vunpack.c.l.b16 %v1736
        %v1769 = vunpack.c.l.b16 %v1737
        %v1770 = vunpack.c.l.b16 %v1738
        %v1771 = vunpack.c.l.b16 %v1739
        %v1772 = vunpack.c.l.b16 %v1740
        %v1773 = vunpack.c.l.b16 %v1741
        %v1774 = vpack.c.b16 %v1759, %v1758
        %v1775 = vpack.c.b16 %v1761, %v1760
        %v1776 = vpack.c.b16 %v1763, %v1762
        %v1777 = vpack.c.b16 %v1765, %v1764
        %v1778 = vpack.c.b16 %v1767, %v1766
        %v1779 = vpack.c.b16 %v1769, %v1768
        %v1780 = vpack.c.b16 %v1771, %v1770
        %v1781 = vpack.c.b16 %v1773, %v1772
        %1790 = vmatprep.subr.bf16.mxu0 0
        %1791 = vmatpush1.bf16.msra.mxu0 %v1774
        %1792 = vmatprep.subr.bf16.mxu0 0
        %1793 = vmatpush1.bf16.msra.mxu0 %v1775
        %1794 = vmatprep.subr.bf16.mxu0 0
        %1795 = vmatpush1.bf16.msra.mxu0 %v1776
        %1796 = vmatprep.subr.bf16.mxu0 0
        %1797 = vmatpush1.bf16.msra.mxu0 %v1777
        %1798 = vmatprep.subr.bf16.mxu0 0
        %1799 = vmatpush1.bf16.msra.mxu0 %v1778
        %1800 = vmatprep.subr.bf16.mxu0 0
        %1801 = vmatpush1.bf16.msra.mxu0 %v1779
        %1802 = vmatprep.subr.bf16.mxu0 0
        %1803 = vmatpush1.bf16.msra.mxu0 %v1780
        %1804 = vmatprep.subr.bf16.mxu0 0
        %1805 = vmatpush1.bf16.msra.mxu0 %v1781
        %1806 = vmatprep.subr.bf16.mxu0 0
        %1807 = vmatpush1.bf16.msra.mxu0 0
        %1808 = vmatprep.subr.bf16.mxu0 0
        %1809 = vmatpush1.bf16.msra.mxu0 0
        %1810 = vmatprep.subr.bf16.mxu0 0
        %1811 = vmatpush1.bf16.msra.mxu0 0
        %1812 = vmatprep.subr.bf16.mxu0 0
        %1813 = vmatpush1.bf16.msra.mxu0 0
        %1814 = vmatprep.subr.bf16.mxu0 0
        %1815 = vmatpush1.bf16.msra.mxu0 0
        %1816 = vmatprep.subr.bf16.mxu0 0
        %1817 = vmatpush1.bf16.msra.mxu0 0
        %1818 = vmatprep.subr.bf16.mxu0 0
        %1819 = vmatpush1.bf16.msra.mxu0 0
        %1820 = vmatprep.subr.bf16.mxu0 0
        %1821 = vmatpush1.bf16.msra.mxu0 0
        %1822 = vmatprep.mubr.bf16.mxu0 0
        %1823 = vmatmul.mubr.bf16.gmra.mrb[0].mxu0 %v1722
        %v1824 = vpop.f32.mrb[0].mxu0
        %v1825 = vadd.f32 0.0, %v1824
        %v1826 = vpop.f32.mrb[0].mxu0
        %v1827 = vpop.f32.mrb[0].mxu0
        %v1828 = vadd.f32 0.0, %v1827
        %v1829 = vpop.f32.mrb[0].mxu0
        %1830 = vmatprep.mubr.bf16.mxu0 0
        %1831 = vmatmul.mubr.bf16.gmra.mrb[0].mxu0 %v1723
        %v1832 = vpop.f32.mrb[0].mxu0
        %v1833 = vadd.f32 0.0, %v1832
        %v1834 = vpop.f32.mrb[0].mxu0
        %v1835 = vpop.f32.mrb[0].mxu0
        %v1836 = vadd.f32 0.0, %v1835
        %v1837 = vpop.f32.mrb[0].mxu0
        %1838 = vmatprep.mubr.bf16.mxu0 0
        %1839 = vmatmul.mubr.bf16.gmra.mrb[0].mxu0 %v1724
        %v1840 = vpop.f32.mrb[0].mxu0
        %v1841 = vadd.f32 0.0, %v1840
        %v1842 = vpop.f32.mrb[0].mxu0
        %v1843 = vpop.f32.mrb[0].mxu0
        %v1844 = vadd.f32 0.0, %v1843
        %v1845 = vpop.f32.mrb[0].mxu0
        %1846 = vmatprep.mubr.bf16.mxu0 0
        %1847 = vmatmul.mubr.bf16.gmra.mrb[0].mxu0 %v1725
        %v1848 = vpop.f32.mrb[0].mxu0
        %v1849 = vadd.f32 0.0, %v1848
        %v1850 = vpop.f32.mrb[0].mxu0
        %v1851 = vpop.f32.mrb[0].mxu0
        %v1852 = vadd.f32 0.0, %v1851
        %v1853 = vpop.f32.mrb[0].mxu0
        %1854 = vdwg.mxu0
        %v1855 = vadd.f32 %v335, %v1825
        %v1856 = vadd.f32 %v336, %v1828
        %v1857 = vadd.f32 %v337, %v1833
        %v1858 = vadd.f32 %v338, %v1836
        %v1859 = vadd.f32 %v339, %v1841
        %v1860 = vadd.f32 %v340, %v1844
        %v1861 = vadd.f32 %v341, %v1849
        %v1862 = vadd.f32 %v342, %v1852
        %v1863 = vld [vmem:[%s7] sm:$0x1]
        %v1865 = vlaneseq
        %v1866 = vshrl.u32 %v1865, 7
        %v1867 = vsub.s32 0, %v1866
        %v1868 = vrot.slane %v1863, %v1867
        %v1870 = vadd.f32 %v1855, %v1868
        %v1871 = vadd.f32 %v1856, %v1868
        %v1872 = vadd.f32 %v1857, %v1868
        %v1873 = vadd.f32 %v1858, %v1868
        %v1874 = vadd.f32 %v1859, %v1868
        %v1875 = vadd.f32 %v1860, %v1868
        %v1876 = vadd.f32 %v1861, %v1868
        %v1877 = vadd.f32 %v1862, %v1868
        %1878 = vst [vmem:[%s328] sm:$0xff] %v1870
        %1879 = vst [vmem:[%s328 + $0x8] sm:$0xff] %v1871
        %1880 = vst [vmem:[%s328 + $0x10] sm:$0xff] %v1872
        %1881 = vst [vmem:[%s328 + $0x18] sm:$0xff] %v1873
        %1882 = vst [vmem:[%s328 + $0x20] sm:$0xff] %v1874
        %1883 = vst [vmem:[%s328 + $0x28] sm:$0xff] %v1875
        %1884 = vst [vmem:[%s328 + $0x30] sm:$0xff] %v1876
        %1885 = vst [vmem:[%s328 + $0x38] sm:$0xff] %v1877
        %s1886 = sand.u32 %s205, 1
        %s1887 = scalar_lea.sflag [#allocation6], %s1886
        %s1888 = sand.u32 %s205, 1
        %s1889 = smul.addr %s1888, 64
        %s1890 = scalar_lea.vmem [#allocation9], %s1889
        // Predicated region
        $region61: #{tpu_custom_call.1} parent=51 // pred_check
          %p1891 = pneg %p215
        $region62: #{tpu_custom_call.1} parent=51 // pred_check_branch
          %1893 = sbr.rel (%p1891) target = $region64
        $region63: #{tpu_custom_call.1} parent=51 // pred_region
          %s1895 = ssub.s32 1024, 1024
          %1896 = vsyncadd %s1887, %s1895
          %s1897 = smul.addr %s24, 8
          %s1898 = smul.addr %s1897, 128
          %s1899 = scalar_lea.hbm %s8, %s1898
          %s1900 = sshll.u32 %s1890, 4
          %s1901 = int_to_ptr.vmem [resolvable:$true] %s1900
          %1906 = dma.vmem_to_hbm [thread:$0]  %s1901, 1024, %s1899, %s1887, 128, 128, 8
        $region64: #{tpu_custom_call.1} parent=51 // pred_fallthru
          _
      $region52: #{tpu_custom_call.1} parent=5 // pred_fallthru
        _
      %p1907 = scmp.le.s32.totalorder 2, %s19
      // Predicated region
      $region65: #{tpu_custom_call.1} parent=5 // pred_check
        %p1908 = pneg %p1907
      $region66: #{tpu_custom_call.1} parent=5 // pred_check_branch
        %1910 = sbr.rel (%p1908) target = $region68
      $region67: #{tpu_custom_call.1} parent=5 // pred_region
        %s1911 = ssub.s32 %s19, 2
        // Predicated region
        $region69: #{tpu_custom_call.1} parent=67 // pred_check
          %p1912 = pneg %p221
        $region70: #{tpu_custom_call.1} parent=67 // pred_check_branch
          %1914 = sbr.rel (%p1912) target = $region72
        $region71: #{tpu_custom_call.1} parent=67 // pred_region
          %s1915 = sand.u32 %s206, 1
          %s1916 = scalar_lea.sflag [#allocation6], %s1915
          %s1917 = sand.u32 %s206, 1
          %s1918 = smul.addr %s1917, 64
          %s1919 = scalar_lea.vmem [#allocation9], %s1918
          %1920 = dma.done %s1916, 1024
        $region72: #{tpu_custom_call.1} parent=67 // pred_fallthru
          _
      $region68: #{tpu_custom_call.1} parent=5 // pred_fallthru
        _
    $region6: #{tpu_custom_call.1} parent=1 // loop_footer
      %s23 = sadd.s32 1, %s19
    $region7: #{tpu_custom_call.1} parent=1 // loop_footer_branch
      %18 = sbr.rel target = $region3
    $region8: #{tpu_custom_call.1} parent=1 // loop_exit
      _
    %1921 = vsyncpa [#allocation5], 1
    %s1922 = scalar_lea.sflag [#allocation5], 1
    %1923 = vsyncpa %s1922, 1
    %1924 = vsyncpa [#allocation8], 1
    %1925 = vsyncpa [#allocation6], 1
    %s1926 = scalar_lea.sflag [#allocation6], 1
    %1927 = vsyncpa %s1926, 1

</llo_original>
